<compile_context>
chip_gen: v5e
topology: v5e:2x2
jax: 0.10.0
libtpu: 0.0.40
codegen_flags: <defaults>
</compile_context>

<pallas_src>
from functools import partial

import jax
import jax.numpy as jnp
from jax.experimental import pallas as pl
from jax.experimental.pallas import tpu as pltpu


def luong_decoder_kernel(
    emb_ref, h_ref, enc_ref,
    w_i_ref, w_h_ref, b_i_ref, b_h_ref,
    w_cat_h_ref, w_cat_c_ref, b_cat_ref,
    w_out_ref, b_out_ref,
    logits_ref, hnew_ref,
    cat_scratch,
):
    """Grid is over vocab tiles. GRU + attention + concat run once (tile 0) and
    the result is held in VMEM scratch; every tile computes one logits slab."""
    j = pl.program_id(0)

    @pl.when(j == 0)
    def _compute_state_and_context():
        H = h_ref.shape[1]
        x = emb_ref[...]                                   # (B, H) bf16 (dropout = identity, eval)
        h = h_ref[...]                                     # (B, H) f32 previous hidden

        # ---- fused single-step GRU (PyTorch gate order r, z, n) ----
        gx = jnp.dot(x, w_i_ref[...],
                     preferred_element_type=jnp.float32) + b_i_ref[...]          # (B, 3H)
        gh = jnp.dot(h.astype(jnp.bfloat16), w_h_ref[...],
                     preferred_element_type=jnp.float32) + b_h_ref[...]          # (B, 3H)
        r = jax.nn.sigmoid(gx[:, :H] + gh[:, :H])
        z = jax.nn.sigmoid(gx[:, H:2 * H] + gh[:, H:2 * H])
        n = jnp.tanh(gx[:, 2 * H:] + r * gh[:, 2 * H:])
        h_new = (1.0 - z) * n + z * h                       # (B, H) f32
        hnew_ref[...] = h_new

        # ---- Luong "dot" attention on the MXU ----
        enc = enc_ref[...]                                  # (B, S, H) bf16
        q = h_new.astype(jnp.bfloat16)[:, None, :]          # (B, 1, H)
        scores = jnp.einsum('bqh,bsh->bqs', q, enc,
                            preferred_element_type=jnp.float32)                  # (B, 1, S)
        m = jnp.max(scores, axis=-1, keepdims=True)
        e = jnp.exp(scores - m)
        attn = e * pl.reciprocal(jnp.sum(e, axis=-1, keepdims=True), approx=True)
        ctx = jnp.einsum('bqs,bsh->bqh', attn.astype(jnp.bfloat16), enc,
                         preferred_element_type=jnp.float32)                     # (B, 1, H)
        context = jnp.squeeze(ctx, axis=1)                  # (B, H) f32

        # ---- concat Linear (split -> no lane-dim concatenate) + tanh ----
        cat = jnp.tanh(
            jnp.dot(h_new.astype(jnp.bfloat16), w_cat_h_ref[...],
                    preferred_element_type=jnp.float32)
            + jnp.dot(context.astype(jnp.bfloat16), w_cat_c_ref[...],
                      preferred_element_type=jnp.float32)
            + b_cat_ref[...])                               # (B, H) f32
        cat_scratch[...] = cat.astype(jnp.bfloat16)

    # ---- streamed output projection: one vocab tile per grid step ----
    logits_ref[...] = (
        jnp.dot(cat_scratch[...], w_out_ref[...],
                preferred_element_type=jnp.float32)
        + b_out_ref[...])


def masked_softmax_kernel(logits_ref, out_ref, *, valid):
    """Row softmax over the (padded) vocab dim; padding lanes masked to -inf."""
    x = logits_ref[...]
    lane = jax.lax.broadcasted_iota(jnp.int32, x.shape, 1)
    x = jnp.where(lane < valid, x, -jnp.inf)
    m = jnp.max(x, axis=1, keepdims=True)
    e = jnp.exp(x - m)
    out_ref[...] = e * pl.reciprocal(jnp.sum(e, axis=1, keepdims=True))


def init_params(key, hidden_size, output_size, num_words):
    H, V = hidden_size, output_size
    ks = jax.random.split(key, 17)
    s = 1.0 / float(H) ** 0.5

    def u(k, shape):
        return jax.random.uniform(k, shape, jnp.float32, -s, s)

    return dict(
        embedding=jax.random.normal(ks[0], (num_words, H), jnp.float32),
        # GRU input->hidden weights, stored pre-transposed (H, H) for x @ W
        w_ir=u(ks[1], (H, H)), w_iz=u(ks[2], (H, H)), w_in=u(ks[3], (H, H)),
        b_ir=u(ks[4], (1, H)), b_iz=u(ks[5], (1, H)), b_in=u(ks[6], (1, H)),
        # GRU hidden->hidden weights
        w_hr=u(ks[7], (H, H)), w_hz=u(ks[8], (H, H)), w_hn=u(ks[9], (H, H)),
        b_hr=u(ks[10], (1, H)), b_hz=u(ks[11], (1, H)), b_hn=u(ks[12], (1, H)),
        # concat Linear(2H -> H), stored transposed (2H, H)
        w_cat=u(ks[13], (2 * H, H)), b_cat=u(ks[14], (1, H)),
        # out Linear(H -> V), stored transposed (H, V)
        w_out=u(ks[15], (H, V)), b_out=u(ks[16], (1, V)),
    )


def pack_params(raw, *, tile_v):
    """One-time packing (hoisted out of the per-token step): fuse GRU gate
    weights, split the concat weight, cast matmul weights to bf16, and pad the
    vocab projection to a multiple of tile_v."""
    bf16 = jnp.bfloat16
    H = raw["w_ir"].shape[0]
    V = raw["w_out"].shape[1]
    Vp = ((V + tile_v - 1) // tile_v) * tile_v
    pad_v = Vp - V
    return dict(
        embedding=raw["embedding"].astype(bf16),
        w_i=jnp.concatenate([raw["w_ir"], raw["w_iz"], raw["w_in"]], axis=1).astype(bf16),
        w_h=jnp.concatenate([raw["w_hr"], raw["w_hz"], raw["w_hn"]], axis=1).astype(bf16),
        b_i=jnp.concatenate([raw["b_ir"], raw["b_iz"], raw["b_in"]], axis=1),
        b_h=jnp.concatenate([raw["b_hr"], raw["b_hz"], raw["b_hn"]], axis=1),
        w_cat_h=raw["w_cat"][:H].astype(bf16),
        w_cat_c=raw["w_cat"][H:].astype(bf16),
        b_cat=raw["b_cat"],
        w_out=jnp.pad(raw["w_out"], ((0, 0), (0, pad_v))).astype(bf16),
        b_out=jnp.pad(raw["b_out"], ((0, 0), (0, pad_v))),
    )


def prepare_encoder_outputs(encoder_outputs):
    """Once per decoded sequence: (S, B, H) -> (B, S, H), bf16 for the MXU."""
    return jnp.transpose(encoder_outputs, (1, 0, 2)).astype(jnp.bfloat16)


def luong_attn_decoder_step(params, input_step, last_hidden, enc_bsh, *,
                            vocab_size, tile_v):
    """input_step: (1, B) int32; last_hidden: (1, B, H) f32; enc_bsh: (B, S, H) bf16."""
    B = input_step.shape[1]
    H = last_hidden.shape[2]
    S = enc_bsh.shape[1]
    Vp = params["w_out"].shape[1]
    assert Vp % tile_v == 0
    num_tiles = Vp // tile_v

    # per-step glue: embedding gather (eval-mode dropout == identity)
    emb = params["embedding"][input_step[0]]              # (B, H) bf16
    h0 = last_hidden[0]                                    # (B, H) f32
    # TODO(synk): only n_layers=1 GRU is modeled (no stacked layers / inter-layer dropout).
    # TODO(synk): embedding gather could be fused in-kernel via PrefetchScalarGridSpec +
    # pl.Element row indexing; kept in the wrapper since the gathered rows are tiny.
    # TODO(synk): in a real decode loop, donate last_hidden and add
    # input_output_aliases={1: 1} so the hidden-state HBM buffer is reused in place.

    grid_spec = pltpu.PrefetchScalarGridSpec(
        num_scalar_prefetch=0,
        grid=(num_tiles,),
        in_specs=[
            pl.BlockSpec((B, H), lambda j: (0, 0)),            # embedded token
            pl.BlockSpec((B, H), lambda j: (0, 0)),            # previous hidden
            pl.BlockSpec((B, S, H), lambda j: (0, 0, 0)),      # encoder outputs
            pl.BlockSpec((H, 3 * H), lambda j: (0, 0)),        # fused W_i
            pl.BlockSpec((H, 3 * H), lambda j: (0, 0)),        # fused W_h
            pl.BlockSpec((1, 3 * H), lambda j: (0, 0)),        # fused b_i
            pl.BlockSpec((1, 3 * H), lambda j: (0, 0)),        # fused b_h
            pl.BlockSpec((H, H), lambda j: (0, 0)),            # w_cat (hidden half)
            pl.BlockSpec((H, H), lambda j: (0, 0)),            # w_cat (context half)
            pl.BlockSpec((1, H), lambda j: (0, 0)),            # b_cat
            pl.BlockSpec((H, tile_v), lambda j: (0, j)),       # w_out tile (streamed)
            pl.BlockSpec((1, tile_v), lambda j: (0, j)),       # b_out tile
        ],
        out_specs=[
            pl.BlockSpec((B, tile_v), lambda j: (0, j)),       # logits tile
            pl.BlockSpec((B, H), lambda j: (0, 0)),            # new hidden (resident)
        ],
        scratch_shapes=[pltpu.VMEM((B, H), jnp.bfloat16)],     # concat output, reused per tile
    )

    logits, h_new = pl.pallas_call(
        luong_decoder_kernel,
        grid_spec=grid_spec,
        out_shape=(
            jax.ShapeDtypeStruct((B, Vp), jnp.float32),
            jax.ShapeDtypeStruct((B, H), jnp.float32),
        ),
        # Reduction-style use of scratch across the vocab axis -> "arbitrary".
        # (A v7x 2-TC "parallel" split would require moving the projection into
        # its own pallas_call.)
        compiler_params=pltpu.CompilerParams(dimension_semantics=("arbitrary",)),
    )(emb, h0, enc_bsh,
      params["w_i"], params["w_h"], params["b_i"], params["b_h"],
      params["w_cat_h"], params["w_cat_c"], params["b_cat"],
      params["w_out"], params["b_out"])

    probs_padded = pl.pallas_call(
        partial(masked_softmax_kernel, valid=vocab_size),
        out_shape=jax.ShapeDtypeStruct((B, Vp), jnp.float32),
        in_specs=[pl.BlockSpec(memory_space=pltpu.MemorySpace.VMEM)],
        out_specs=pl.BlockSpec(memory_space=pltpu.MemorySpace.VMEM),
    )(logits)

    output = probs_padded[:, :vocab_size]                  # (B, V) softmax probs
    return output, h_new[None]                              # hidden: (n_layers=1, B, H)


def reference_forward(params, input_step, last_hidden, enc_bsh, vocab_size):
    """Pure-JAX reference using the same (packed) parameters."""
    f32 = jnp.float32
    emb = params["embedding"][input_step[0]].astype(f32)
    h = last_hidden[0]
    H = h.shape[1]
    gx = emb @ params["w_i"].astype(f32) + params["b_i"]
    gh = h @ params["w_h"].astype(f32) + params["b_h"]
    r = jax.nn.sigmoid(gx[:, :H] + gh[:, :H])
    z = jax.nn.sigmoid(gx[:, H:2 * H] + gh[:, H:2 * H])
    n = jnp.tanh(gx[:, 2 * H:] + r * gh[:, 2 * H:])
    h_new = (1.0 - z) * n + z * h
    enc = enc_bsh.astype(f32)
    scores = jnp.einsum('bh,bsh->bs', h_new, enc)
    attn = jax.nn.softmax(scores, axis=1)
    context = jnp.einsum('bs,bsh->bh', attn, enc)
    cat = jnp.tanh(h_new @ params["w_cat_h"].astype(f32)
                   + context @ params["w_cat_c"].astype(f32) + params["b_cat"])
    logits = cat @ params["w_out"].astype(f32) + params["b_out"]
    probs = jax.nn.softmax(logits[:, :vocab_size], axis=1)
    return probs, h_new[None]


if __name__ == "__main__":
    # Small but hardware-aligned shapes: B multiple of 8, H / V multiples of 128.
    B, H, S, V, n_layers = 8, 128, 8, 256, 1
    TILE_V = 128   # 2 vocab tiles -> exercises the streamed / pipelined projection

    key = jax.random.PRNGKey(0)
    kp, k1, k2, k3 = jax.random.split(key, 4)

    raw = init_params(kp, hidden_size=H, output_size=V, num_words=V)
    params = pack_params(raw, tile_v=TILE_V)

    input_step = jax.random.randint(k1, (1, B), 0, V, dtype=jnp.int32)
    last_hidden = jax.random.normal(k2, (n_layers, B, H), jnp.float32)
    encoder_outputs = jax.random.normal(k3, (S, B, H), jnp.float32)

    # hoisted once-per-sequence prep (layout transpose + bf16 cast)
    enc_bsh = prepare_encoder_outputs(encoder_outputs)

    fn = jax.jit(partial(luong_attn_decoder_step, params,
                         vocab_size=V, tile_v=TILE_V))
    output, hidden = fn(input_step, last_hidden, enc_bsh)
    jax.block_until_ready((output, hidden))

    assert output.shape == (B, V)
    assert hidden.shape == (n_layers, B, H)
    # output rows are a softmax -> should sum to ~1
    assert bool(jnp.all(jnp.abs(jnp.sum(output, axis=1) - 1.0) < 1e-3))

    # correctness vs a pure-JAX reference (bf16 activations -> loose tolerance)
    ref_out, ref_hidden = reference_forward(params, input_step, last_hidden, enc_bsh, V)
    assert bool(jnp.all(jnp.abs(output - ref_out) < 2e-2))
    assert bool(jnp.all(jnp.abs(hidden - ref_hidden) < 2e-2))

    print("KERNEL_OK")
</pallas_src>

<mosaic_0001>
module attributes {stable_mosaic.version = 11 : i64} {
  func.func @luong_decoder_kernel(%arg0: i32, %arg1: memref<8x128xbf16, #tpu.memory_space<vmem>>, %arg2: memref<8x128xf32, #tpu.memory_space<vmem>>, %arg3: memref<8x8x128xbf16, #tpu.memory_space<vmem>>, %arg4: memref<128x384xbf16, #tpu.memory_space<vmem>>, %arg5: memref<128x384xbf16, #tpu.memory_space<vmem>>, %arg6: memref<1x384xf32, #tpu.memory_space<vmem>>, %arg7: memref<1x384xf32, #tpu.memory_space<vmem>>, %arg8: memref<128x128xbf16, #tpu.memory_space<vmem>>, %arg9: memref<128x128xbf16, #tpu.memory_space<vmem>>, %arg10: memref<1x128xf32, #tpu.memory_space<vmem>>, %arg11: memref<128x128xbf16, #tpu.memory_space<vmem>>, %arg12: memref<1x128xf32, #tpu.memory_space<vmem>>, %arg13: memref<8x128xf32, #tpu.memory_space<vmem>>, %arg14: memref<8x128xf32, #tpu.memory_space<vmem>>, %arg15: memref<8x128xbf16, #tpu.memory_space<vmem>>) attributes {dimension_semantics = [#tpu.dimension_semantics<arbitrary>], iteration_bounds = array<i64: 2>, scalar_prefetch = 0 : i64, scratch_operands = 1 : i64, tpu.core_type = #tpu.core_type<tc>, window_params = [{pipeline_mode = #tpu.pipeline_mode<synchronous>, transform_indices = @transform_0, window_bounds = array<i64: 8, 128>}, {pipeline_mode = #tpu.pipeline_mode<synchronous>, transform_indices = @transform_1, window_bounds = array<i64: 8, 128>}, {pipeline_mode = #tpu.pipeline_mode<synchronous>, transform_indices = @transform_2, window_bounds = array<i64: 8, 8, 128>}, {pipeline_mode = #tpu.pipeline_mode<synchronous>, transform_indices = @transform_3, window_bounds = array<i64: 128, 384>}, {pipeline_mode = #tpu.pipeline_mode<synchronous>, transform_indices = @transform_4, window_bounds = array<i64: 128, 384>}, {pipeline_mode = #tpu.pipeline_mode<synchronous>, transform_indices = @transform_5, window_bounds = array<i64: 1, 384>}, {pipeline_mode = #tpu.pipeline_mode<synchronous>, transform_indices = @transform_6, window_bounds = array<i64: 1, 384>}, {pipeline_mode = #tpu.pipeline_mode<synchronous>, transform_indices = @transform_7, window_bounds = array<i64: 128, 128>}, {pipeline_mode = #tpu.pipeline_mode<synchronous>, transform_indices = @transform_8, window_bounds = array<i64: 128, 128>}, {pipeline_mode = #tpu.pipeline_mode<synchronous>, transform_indices = @transform_9, window_bounds = array<i64: 1, 128>}, {transform_indices = @transform_10, window_bounds = array<i64: 128, 128>}, {transform_indices = @transform_11, window_bounds = array<i64: 1, 128>}, {transform_indices = @transform_12, window_bounds = array<i64: 8, 128>}, {pipeline_mode = #tpu.pipeline_mode<synchronous>, transform_indices = @transform_13, window_bounds = array<i64: 8, 128>}]} {
    %c0_i32 = arith.constant 0 : i32
    %0 = arith.cmpi eq, %arg0, %c0_i32 : i32
    %1 = arith.extui %0 : i1 to i32
    %c0_i32_0 = arith.constant 0 : i32
    %2 = arith.cmpi ne, %1, %c0_i32_0 : i32
    scf.if %2 {
      %c0_8 = arith.constant 0 : index
      %c0_9 = arith.constant 0 : index
      %10 = vector.load %arg1[%c0_8, %c0_9] : memref<8x128xbf16, #tpu.memory_space<vmem>>, vector<8x128xbf16>
      %c0_10 = arith.constant 0 : index
      %c0_11 = arith.constant 0 : index
      %11 = vector.load %arg2[%c0_10, %c0_11] : memref<8x128xf32, #tpu.memory_space<vmem>>, vector<8x128xf32>
      %c0_12 = arith.constant 0 : index
      %c0_13 = arith.constant 0 : index
      %12 = vector.load %arg4[%c0_12, %c0_13] : memref<128x384xbf16, #tpu.memory_space<vmem>>, vector<128x384xbf16>
      %cst_14 = arith.constant dense<0.000000e+00> : vector<8x384xf32>
      %13 = tpu.matmul %10, %12, %cst_14 {dimension_numbers = #tpu.dot_dimension_numbers<[1], [0], [0], [1], [0, 0, 1, 1], [], []>} : vector<8x128xbf16>, vector<128x384xbf16>, vector<8x384xf32> -> vector<8x384xf32>
      %c0_15 = arith.constant 0 : index
      %c0_16 = arith.constant 0 : index
      %14 = vector.load %arg6[%c0_15, %c0_16] : memref<1x384xf32, #tpu.memory_space<vmem>>, vector<1x384xf32>
      %15 = vector.broadcast %14 : vector<1x384xf32> to vector<8x384xf32>
      %16 = arith.addf %13, %15 : vector<8x384xf32>
      %17 = arith.truncf %11 : vector<8x128xf32> to vector<8x128xbf16>
      %c0_17 = arith.constant 0 : index
      %c0_18 = arith.constant 0 : index
      %18 = vector.load %arg5[%c0_17, %c0_18] : memref<128x384xbf16, #tpu.memory_space<vmem>>, vector<128x384xbf16>
      %cst_19 = arith.constant dense<0.000000e+00> : vector<8x384xf32>
      %19 = tpu.matmul %17, %18, %cst_19 {dimension_numbers = #tpu.dot_dimension_numbers<[1], [0], [0], [1], [0, 0, 1, 1], [], []>} : vector<8x128xbf16>, vector<128x384xbf16>, vector<8x384xf32> -> vector<8x384xf32>
      %c0_20 = arith.constant 0 : index
      %c0_21 = arith.constant 0 : index
      %20 = vector.load %arg7[%c0_20, %c0_21] : memref<1x384xf32, #tpu.memory_space<vmem>>, vector<1x384xf32>
      %21 = vector.broadcast %20 : vector<1x384xf32> to vector<8x384xf32>
      %22 = arith.addf %19, %21 : vector<8x384xf32>
      %23 = vector.extract_strided_slice %16 {offsets = [0, 0], sizes = [8, 128], strides = [1, 1]} : vector<8x384xf32> to vector<8x128xf32>
      %24 = vector.extract_strided_slice %22 {offsets = [0, 0], sizes = [8, 128], strides = [1, 1]} : vector<8x384xf32> to vector<8x128xf32>
      %25 = arith.addf %23, %24 : vector<8x128xf32>
      %26 = arith.negf %25 : vector<8x128xf32>
      %27 = math.exp %26 : vector<8x128xf32>
      %cst_22 = arith.constant 1.000000e+00 : f32
      %28 = vector.broadcast %cst_22 : f32 to vector<8x128xf32>
      %29 = arith.addf %28, %27 : vector<8x128xf32>
      %30 = arith.divf %28, %29 : vector<8x128xf32>
      %31 = vector.extract_strided_slice %16 {offsets = [0, 128], sizes = [8, 128], strides = [1, 1]} : vector<8x384xf32> to vector<8x128xf32>
      %32 = vector.extract_strided_slice %22 {offsets = [0, 128], sizes = [8, 128], strides = [1, 1]} : vector<8x384xf32> to vector<8x128xf32>
      %33 = arith.addf %31, %32 : vector<8x128xf32>
      %34 = arith.negf %33 : vector<8x128xf32>
      %35 = math.exp %34 : vector<8x128xf32>
      %cst_23 = arith.constant 1.000000e+00 : f32
      %36 = vector.broadcast %cst_23 : f32 to vector<8x128xf32>
      %37 = arith.addf %36, %35 : vector<8x128xf32>
      %38 = arith.divf %36, %37 : vector<8x128xf32>
      %39 = vector.extract_strided_slice %16 {offsets = [0, 256], sizes = [8, 128], strides = [1, 1]} : vector<8x384xf32> to vector<8x128xf32>
      %40 = vector.extract_strided_slice %22 {offsets = [0, 256], sizes = [8, 128], strides = [1, 1]} : vector<8x384xf32> to vector<8x128xf32>
      %41 = arith.mulf %30, %40 : vector<8x128xf32>
      %42 = arith.addf %39, %41 : vector<8x128xf32>
      %43 = math.tanh %42 : vector<8x128xf32>
      %cst_24 = arith.constant 1.000000e+00 : f32
      %44 = vector.broadcast %cst_24 : f32 to vector<8x128xf32>
      %45 = arith.subf %44, %38 : vector<8x128xf32>
      %46 = arith.mulf %45, %43 : vector<8x128xf32>
      %47 = arith.mulf %38, %11 : vector<8x128xf32>
      %48 = arith.addf %46, %47 : vector<8x128xf32>
      %c0_25 = arith.constant 0 : index
      %c0_26 = arith.constant 0 : index
      %49 = vector.load %arg14[%c0_25, %c0_26] : memref<8x128xf32, #tpu.memory_space<vmem>>, vector<8x128xf32>
      tpu.vector_store %arg14[%c0_25, %c0_26], %48 {strides = array<i32>} : memref<8x128xf32, #tpu.memory_space<vmem>>, vector<8x128xf32>,
      %c0_27 = arith.constant 0 : index
      %c0_28 = arith.constant 0 : index
      %c0_29 = arith.constant 0 : index
      %50 = vector.load %arg3[%c0_27, %c0_28, %c0_29] : memref<8x8x128xbf16, #tpu.memory_space<vmem>>, vector<8x8x128xbf16>
      %51 = arith.truncf %48 : vector<8x128xf32> to vector<8x128xbf16>
      %52 = vector.shape_cast %51 : vector<8x128xbf16> to vector<8x1x128xbf16>
      "tpu.trace_start"() <{level = 10 : i32, message = "bqh,bsh->bqs"}> : () -> ()
      %cst_30 = arith.constant dense<0.000000e+00> : vector<8x1x8xf32>
      %53 = tpu.matmul %52, %50, %cst_30 {dimension_numbers = #tpu.dot_dimension_numbers<[2], [2], [1], [1], [0, 0, 0, 1, 1, 1], [0], [0]>} : vector<8x1x128xbf16>, vector<8x8x128xbf16>, vector<8x1x8xf32> -> vector<8x1x8xf32>
      "tpu.trace_stop"() : () -> ()
      %cst_31 = arith.constant dense<0xFF800000> : vector<8x1xf32>
      %54 = vector.multi_reduction <maximumf>, %53, %cst_31 [2] : vector<8x1x8xf32> to vector<8x1xf32>
      %55 = vector.shape_cast %54 : vector<8x1xf32> to vector<8x1x1xf32>
      %56 = vector.broadcast %55 : vector<8x1x1xf32> to vector<8x1x8xf32>
      %57 = arith.subf %53, %56 : vector<8x1x8xf32>
      %58 = math.exp %57 : vector<8x1x8xf32>
      %cst_32 = arith.constant dense<0.000000e+00> : vector<8x1xf32>
      %59 = vector.multi_reduction <add>, %58, %cst_32 [2] : vector<8x1x8xf32> to vector<8x1xf32>
      %60 = vector.shape_cast %59 : vector<8x1xf32> to vector<8x1x1xf32>
      %61 = tpu.reciprocal %60 {approx = true} : vector<8x1x1xf32> -> vector<8x1x1xf32>
      %62 = vector.broadcast %61 : vector<8x1x1xf32> to vector<8x1x8xf32>
      %63 = arith.mulf %58, %62 : vector<8x1x8xf32>
      %64 = arith.truncf %63 : vector<8x1x8xf32> to vector<8x1x8xbf16>
      "tpu.trace_start"() <{level = 10 : i32, message = "bqs,bsh->bqh"}> : () -> ()
      %cst_33 = arith.constant dense<0.000000e+00> : vector<8x1x128xf32>
      %65 = tpu.matmul %64, %50, %cst_33 {dimension_numbers = #tpu.dot_dimension_numbers<[2], [1], [1], [2], [0, 0, 0, 1, 1, 2], [0], [0]>} : vector<8x1x8xbf16>, vector<8x8x128xbf16>, vector<8x1x128xf32> -> vector<8x1x128xf32>
      "tpu.trace_stop"() : () -> ()
      %66 = vector.shape_cast %65 : vector<8x1x128xf32> to vector<8x128xf32>
      %67 = arith.truncf %48 : vector<8x128xf32> to vector<8x128xbf16>
      %c0_34 = arith.constant 0 : index
      %c0_35 = arith.constant 0 : index
      %68 = vector.load %arg8[%c0_34, %c0_35] : memref<128x128xbf16, #tpu.memory_space<vmem>>, vector<128x128xbf16>
      %cst_36 = arith.constant dense<0.000000e+00> : vector<8x128xf32>
      %69 = tpu.matmul %67, %68, %cst_36 {dimension_numbers = #tpu.dot_dimension_numbers<[1], [0], [0], [1], [0, 0, 1, 1], [], []>} : vector<8x128xbf16>, vector<128x128xbf16>, vector<8x128xf32> -> vector<8x128xf32>
      %70 = arith.truncf %66 : vector<8x128xf32> to vector<8x128xbf16>
      %c0_37 = arith.constant 0 : index
      %c0_38 = arith.constant 0 : index
      %71 = vector.load %arg9[%c0_37, %c0_38] : memref<128x128xbf16, #tpu.memory_space<vmem>>, vector<128x128xbf16>
      %cst_39 = arith.constant dense<0.000000e+00> : vector<8x128xf32>
      %72 = tpu.matmul %70, %71, %cst_39 {dimension_numbers = #tpu.dot_dimension_numbers<[1], [0], [0], [1], [0, 0, 1, 1], [], []>} : vector<8x128xbf16>, vector<128x128xbf16>, vector<8x128xf32> -> vector<8x128xf32>
      %73 = arith.addf %69, %72 : vector<8x128xf32>
      %c0_40 = arith.constant 0 : index
      %c0_41 = arith.constant 0 : index
      %74 = vector.load %arg10[%c0_40, %c0_41] : memref<1x128xf32, #tpu.memory_space<vmem>>, vector<1x128xf32>
      %75 = vector.broadcast %74 : vector<1x128xf32> to vector<8x128xf32>
      %76 = arith.addf %73, %75 : vector<8x128xf32>
      %77 = math.tanh %76 : vector<8x128xf32>
      %78 = arith.truncf %77 : vector<8x128xf32> to vector<8x128xbf16>
      %c0_42 = arith.constant 0 : index
      %c0_43 = arith.constant 0 : index
      %79 = vector.load %arg15[%c0_42, %c0_43] : memref<8x128xbf16, #tpu.memory_space<vmem>>, vector<8x128xbf16>
      tpu.vector_store %arg15[%c0_42, %c0_43], %78 {strides = array<i32>} : memref<8x128xbf16, #tpu.memory_space<vmem>>, vector<8x128xbf16>,
    } else {
    }
    %c0 = arith.constant 0 : index
    %c0_1 = arith.constant 0 : index
    %3 = vector.load %arg15[%c0, %c0_1] : memref<8x128xbf16, #tpu.memory_space<vmem>>, vector<8x128xbf16>
    %c0_2 = arith.constant 0 : index
    %c0_3 = arith.constant 0 : index
    %4 = vector.load %arg11[%c0_2, %c0_3] : memref<128x128xbf16, #tpu.memory_space<vmem>>, vector<128x128xbf16>
    %cst = arith.constant dense<0.000000e+00> : vector<8x128xf32>
    %5 = tpu.matmul %3, %4, %cst {dimension_numbers = #tpu.dot_dimension_numbers<[1], [0], [0], [1], [0, 0, 1, 1], [], []>} : vector<8x128xbf16>, vector<128x128xbf16>, vector<8x128xf32> -> vector<8x128xf32>
    %c0_4 = arith.constant 0 : index
    %c0_5 = arith.constant 0 : index
    %6 = vector.load %arg12[%c0_4, %c0_5] : memref<1x128xf32, #tpu.memory_space<vmem>>, vector<1x128xf32>
    %7 = vector.broadcast %6 : vector<1x128xf32> to vector<8x128xf32>
    %8 = arith.addf %5, %7 : vector<8x128xf32>
    %c0_6 = arith.constant 0 : index
    %c0_7 = arith.constant 0 : index
    %9 = vector.load %arg13[%c0_6, %c0_7] : memref<8x128xf32, #tpu.memory_space<vmem>>, vector<8x128xf32>
    tpu.vector_store %arg13[%c0_6, %c0_7], %8 {strides = array<i32>} : memref<8x128xf32, #tpu.memory_space<vmem>>, vector<8x128xf32>,
    return
  }
  func.func @transform_0(%arg0: i32) -> (i32, i32) {
    %c0_i32 = arith.constant 0 : i32
    %c0_i32_0 = arith.constant 0 : i32
    %c0_i32_1 = arith.constant 0 : i32
    return %c0_i32, %c0_i32_0 : i32, i32
  }
  func.func @transform_1(%arg0: i32) -> (i32, i32) {
    %c0_i32 = arith.constant 0 : i32
    %c0_i32_0 = arith.constant 0 : i32
    %c0_i32_1 = arith.constant 0 : i32
    return %c0_i32, %c0_i32_0 : i32, i32
  }
  func.func @transform_2(%arg0: i32) -> (i32, i32, i32) {
    %c0_i32 = arith.constant 0 : i32
    %c0_i32_0 = arith.constant 0 : i32
    %c0_i32_1 = arith.constant 0 : i32
    %c0_i32_2 = arith.constant 0 : i32
    return %c0_i32, %c0_i32_0, %c0_i32_1 : i32, i32, i32
  }
  func.func @transform_3(%arg0: i32) -> (i32, i32) {
    %c0_i32 = arith.constant 0 : i32
    %c0_i32_0 = arith.constant 0 : i32
    %c0_i32_1 = arith.constant 0 : i32
    return %c0_i32, %c0_i32_0 : i32, i32
  }
  func.func @transform_4(%arg0: i32) -> (i32, i32) {
    %c0_i32 = arith.constant 0 : i32
    %c0_i32_0 = arith.constant 0 : i32
    %c0_i32_1 = arith.constant 0 : i32
    return %c0_i32, %c0_i32_0 : i32, i32
  }
  func.func @transform_5(%arg0: i32) -> (i32, i32) {
    %c0_i32 = arith.constant 0 : i32
    %c0_i32_0 = arith.constant 0 : i32
    %c0_i32_1 = arith.constant 0 : i32
    return %c0_i32, %c0_i32_0 : i32, i32
  }
  func.func @transform_6(%arg0: i32) -> (i32, i32) {
    %c0_i32 = arith.constant 0 : i32
    %c0_i32_0 = arith.constant 0 : i32
    %c0_i32_1 = arith.constant 0 : i32
    return %c0_i32, %c0_i32_0 : i32, i32
  }
  func.func @transform_7(%arg0: i32) -> (i32, i32) {
    %c0_i32 = arith.constant 0 : i32
    %c0_i32_0 = arith.constant 0 : i32
    %c0_i32_1 = arith.constant 0 : i32
    return %c0_i32, %c0_i32_0 : i32, i32
  }
  func.func @transform_8(%arg0: i32) -> (i32, i32) {
    %c0_i32 = arith.constant 0 : i32
    %c0_i32_0 = arith.constant 0 : i32
    %c0_i32_1 = arith.constant 0 : i32
    return %c0_i32, %c0_i32_0 : i32, i32
  }
  func.func @transform_9(%arg0: i32) -> (i32, i32) {
    %c0_i32 = arith.constant 0 : i32
    %c0_i32_0 = arith.constant 0 : i32
    %c0_i32_1 = arith.constant 0 : i32
    return %c0_i32, %c0_i32_0 : i32, i32
  }
  func.func @transform_10(%arg0: i32) -> (i32, i32) {
    %c0_i32 = arith.constant 0 : i32
    %c0_i32_0 = arith.constant 0 : i32
    return %c0_i32, %arg0 : i32, i32
  }
  func.func @transform_11(%arg0: i32) -> (i32, i32) {
    %c0_i32 = arith.constant 0 : i32
    %c0_i32_0 = arith.constant 0 : i32
    return %c0_i32, %arg0 : i32, i32
  }
  func.func @transform_12(%arg0: i32) -> (i32, i32) {
    %c0_i32 = arith.constant 0 : i32
    %c0_i32_0 = arith.constant 0 : i32
    return %c0_i32, %arg0 : i32, i32
  }
  func.func @transform_13(%arg0: i32) -> (i32, i32) {
    %c0_i32 = arith.constant 0 : i32
    %c0_i32_0 = arith.constant 0 : i32
    %c0_i32_1 = arith.constant 0 : i32
    return %c0_i32, %c0_i32_0 : i32, i32
  }
}

module attributes {stable_mosaic.version = 11 : i64} {
  func.func @masked_softmax_kernel(%arg0: memref<8x256xf32, #tpu.memory_space<vmem>>, %arg1: memref<8x256xf32, #tpu.memory_space<vmem>>) attributes {dimension_semantics = [], scalar_prefetch = 0 : i64, scratch_operands = 0 : i64, tpu.core_type = #tpu.core_type<tc>} {
    %c0 = arith.constant 0 : index
    %c0_0 = arith.constant 0 : index
    %0 = vector.load %arg0[%c0, %c0_0] : memref<8x256xf32, #tpu.memory_space<vmem>>, vector<8x256xf32>
    %1 = tpu.iota {dimensions = array<i32: 1>} : vector<8x256xi32>
    %c256_i32 = arith.constant 256 : i32
    %2 = vector.broadcast %c256_i32 : i32 to vector<8x256xi32>
    %3 = arith.cmpi slt, %1, %2 : vector<8x256xi32>
    %cst = arith.constant 0xFF800000 : f32
    %4 = vector.broadcast %cst : f32 to vector<8x256xf32>
    %5 = arith.select %3, %0, %4 : vector<8x256xi1>, vector<8x256xf32>
    %cst_1 = arith.constant dense<0xFF800000> : vector<8xf32>
    %6 = vector.multi_reduction <maximumf>, %5, %cst_1 [1] : vector<8x256xf32> to vector<8xf32>
    %7 = vector.shape_cast %6 : vector<8xf32> to vector<8x1xf32>
    %8 = vector.broadcast %7 : vector<8x1xf32> to vector<8x256xf32>
    %9 = arith.subf %5, %8 : vector<8x256xf32>
    %10 = math.exp %9 : vector<8x256xf32>
    %cst_2 = arith.constant dense<0.000000e+00> : vector<8xf32>
    %11 = vector.multi_reduction <add>, %10, %cst_2 [1] : vector<8x256xf32> to vector<8xf32>
    %12 = vector.shape_cast %11 : vector<8xf32> to vector<8x1xf32>
    %13 = tpu.reciprocal %12 : vector<8x1xf32> -> vector<8x1xf32>
    %14 = vector.broadcast %13 : vector<8x1xf32> to vector<8x256xf32>
    %15 = arith.mulf %10, %14 : vector<8x256xf32>
    %c0_3 = arith.constant 0 : index
    %c0_4 = arith.constant 0 : index
    %16 = vector.load %arg1[%c0_3, %c0_4] : memref<8x256xf32, #tpu.memory_space<vmem>>, vector<8x256xf32>
    tpu.vector_store %arg1[%c0_3, %c0_4], %15 {strides = array<i32>} : memref<8x256xf32, #tpu.memory_space<vmem>>, vector<8x256xf32>,
    return
  }
}

</mosaic_0001>

<llo_original>
// kernel: luong_attn_decoder_step.3
$region0: #{luong_attn_decoder_step.3}
  #allocation0 [shape = 'u32[]', space=smem, size = 0x4, offset = 0x4, fixed_abs, tag = 'smem constant byte address 0x4 - core index']
  #allocation1 [shape = 'u32[72,128]{1,0:T(1,128)}', space=vmem, size = 0x9000, scoped, tag = 'internal scratch']
  %s0 = inlined_call_operand.vmem [shape: f32[8,256], index: 0, kind: input, shape index: {}]
  %s1 = inlined_call_operand.hbm [shape: f32[8,256], index: 1, kind: output, shape index: {}]
  %s2 = sld [smem:[#allocation0]]
  $region14: #{luong_attn_decoder_step.3} parent=0
    _
  %s4 = ssub.s32 1, %s2
  %s5 = scalar_select 0, %s4, %s2
  $region1: #{luong_attn_decoder_step.3} parent=0
    #allocation2 [shape = 'u8[8192]{0}', space=vmem, size = 0x2000, scoped, tag = 'output window, operand 0, single buffered']
    #allocation3 [shape = 's32[1]{0}', space=sflag, size = 0x4, scoped, tag = 'scoped memory for luong_attn_decoder_step.3']
    %6 = vsyncpa [#allocation3], 0
    // Predicated region
    $region2: #{luong_attn_decoder_step.3} parent=1 // pred_check
      _
    $region3: #{luong_attn_decoder_step.3} parent=1 // pred_check_branch
      %8 = sbr.rel (0) target = $region5
    $region4: #{luong_attn_decoder_step.3} parent=1 // pred_region
      _
    $region5: #{luong_attn_decoder_step.3} parent=1 // pred_fallthru
      _
    %v9 = vld [vmem:[%s0] sm:$0xff]
    %v10 = vld [vmem:[%s0 + $0x8] sm:$0xff]
    %v11 = vlaneseq
    %v12 = vand.u32 %v11, 127
    %v13 = vadd.s32 %v12, 128
    %vm14 = vcmp.lt.s32.totalorder %v12, 256
    %vm15 = vcmp.lt.s32.totalorder %v13, 256
    %v16 = vsel %vm14, %v9, -inf
    %v17 = vsel %vm15, %v10, -inf
    %v18 = vmax.f32 %v16, %v17
    %19 = vmax.xlane.f32.xlu0 %v18
    %v20 = vpop.xlane.xlu0 %19
    %v21 = vsub.f32 %v16, %v20
    %v22 = vsub.f32 %v17, %v20
    %v23 = vmul.f32 %v21, 1.442695
    %v24 = vpow.pop %v23
    %v25 = vmul.f32 %v22, 1.442695
    %v26 = vpow.pop %v25
    %v27 = vadd.f32 %v24, %v26
    %28 = vadd.xlane.f32.xlu0 %v27
    %v29 = vpop.xlane.xlu0 %28
    %v30 = vrcp.pop %v29
    %v31 = vmul.f32 %v29, %v30
    %v32 = vsub.f32 1.0, %v31
    %v33 = vmul.f32 %v30, %v32
    %v34 = vadd.f32 %v30, %v33
    %vm35 = vweird.f32 %v29
    %vm36 = vweird.f32 %v30
    %vm37 = vmor %vm35, %vm36
    %v38 = vsel %vm37, %v30, %v34
    %v39 = vand.u32 2147483647, %v29
    %vm40 = vcmp.eq.f32.partialorder %v39, 8.507059e+37
    %v41 = vand.u32 %v29, 2147483648
    %v42 = vor.u32 1.1754944e-38, %v41
    %v43 = vsel %vm40, %v42, %v38
    %v44 = vmul.f32 %v24, %v43
    %v45 = vmul.f32 %v26, %v43
    %46 = vst [vmem:[#allocation2] sm:$0xff] %v44
    %47 = vst [vmem:[#allocation2 + $0x8] sm:$0xff] %v45
    // Predicated region
    $region6: #{luong_attn_decoder_step.3} parent=1 // pred_check
      _
    $region7: #{luong_attn_decoder_step.3} parent=1 // pred_check_branch
      %49 = sbr.rel (0) target = $region9
    $region8: #{luong_attn_decoder_step.3} parent=1 // pred_region
      %51 = vsyncadd [#allocation3], 0
      %s53 = sshll.u32 [#allocation2], 4
      %s54 = int_to_ptr.vmem [resolvable:$true] %s53
      %s55 = sshll.u32 %s1, 4
      %s56 = int_to_ptr.hbm [resolvable:$true] %s55
      %58 = dma.vmem_to_hbm [thread:$0]  %s54, 256, %s56, [#allocation3]
    $region9: #{luong_attn_decoder_step.3} parent=1 // pred_fallthru
      _
    // Predicated region
    $region10: #{luong_attn_decoder_step.3} parent=1 // pred_check
      _
    $region11: #{luong_attn_decoder_step.3} parent=1 // pred_check_branch
      %60 = sbr.rel (0) target = $region13
    $region12: #{luong_attn_decoder_step.3} parent=1 // pred_region
      %62 = dma.done [#allocation3], 256
    $region13: #{luong_attn_decoder_step.3} parent=1 // pred_fallthru
      _
    %63 = vsyncpa [#allocation3], 1

// kernel: luong_attn_decoder_step.2
$region0: #{luong_attn_decoder_step.2}
  #allocation0 [shape = 'u32[]', space=smem, size = 0x4, offset = 0x4, fixed_abs, tag = 'smem constant byte address 0x4 - core index']
  #allocation1 [shape = 'u32[72,128]{1,0:T(1,128)}', space=vmem, size = 0x9000, scoped, tag = 'internal scratch']
  #allocation2 [shape = 'bf16[8,128]{1,0:T(8,128)(2,1)}', space=vmem, size = 0x800, scoped, tag = 'scratch operand']
  %s0 = inlined_call_operand.vmem [shape: bf16[8,128], index: 0, kind: input, shape index: {}]
  %s1 = inlined_call_operand.vmem [shape: f32[8,128], index: 1, kind: input, shape index: {}]
  %s2 = inlined_call_operand.vmem [shape: bf16[8,8,128], index: 2, kind: input, shape index: {}]
  %s3 = inlined_call_operand.hbm [shape: bf16[128,384], index: 3, kind: input, shape index: {}]
  %s4 = inlined_call_operand.hbm [shape: bf16[128,384], index: 4, kind: input, shape index: {}]
  %s5 = inlined_call_operand.vmem [shape: f32[1,384], index: 5, kind: input, shape index: {}]
  %s6 = inlined_call_operand.vmem [shape: f32[1,384], index: 6, kind: input, shape index: {}]
  %s7 = inlined_call_operand.hbm [shape: bf16[128,128], index: 7, kind: input, shape index: {}]
  %s8 = inlined_call_operand.hbm [shape: bf16[128,128], index: 8, kind: input, shape index: {}]
  %s9 = inlined_call_operand.vmem [shape: f32[1,128], index: 9, kind: input, shape index: {}]
  %s10 = inlined_call_operand.hbm [shape: bf16[128,256], index: 10, kind: input, shape index: {}]
  %s11 = inlined_call_operand.vmem [shape: f32[1,256], index: 11, kind: input, shape index: {}]
  %s12 = inlined_call_operand.vmem [shape: f32[8,256], index: 12, kind: output, shape index: {0}]
  %s13 = inlined_call_operand.hbm [shape: f32[8,128], index: 13, kind: output, shape index: {1}]
  %14 = xla_tuple %s12, %s13
  %s15 = sld [smem:[#allocation0]]
  $region113: #{luong_attn_decoder_step.2} parent=0
    _
  %s17 = ssub.s32 1, %s15
  %s18 = scalar_select 0, %s17, %s15
  $region1: #{luong_attn_decoder_step.2} parent=0
    #allocation3 [shape = 'u8[98304]{0}', space=vmem, size = 0x18000, scoped, tag = 'input window, operand 3, single buffered']
    #allocation4 [shape = 's32[2]{0}', space=sflag, size = 0x8, scoped, tag = 'scoped memory for luong_attn_decoder_step.2']
    #allocation5 [shape = 's32[2]{0}', space=sflag, size = 0x8, scoped, tag = 'scoped memory for luong_attn_decoder_step.2']
    #allocation6 [shape = 'u8[98304]{0}', space=vmem, size = 0x18000, scoped, tag = 'input window, operand 4, single buffered']
    #allocation7 [shape = 's32[1]{0}', space=sflag, size = 0x4, scoped, tag = 'scoped memory for luong_attn_decoder_step.2']
    #allocation8 [shape = 'u8[32768]{0}', space=vmem, size = 0x8000, scoped, tag = 'input window, operand 7, single buffered']
    #allocation9 [shape = 'u8[32768]{0}', space=vmem, size = 0x8000, scoped, tag = 'input window, operand 8, single buffered']
    #allocation10 [shape = 's32[1]{0}', space=sflag, size = 0x4, scoped, tag = 'scoped memory for luong_attn_decoder_step.2']
    #allocation11 [shape = 'u8[65536]{0}', space=vmem, size = 0x10000, scoped, tag = 'input window, operand 10']
    #allocation12 [shape = 'u8[4096]{0}', space=vmem, size = 0x1000, scoped, tag = 'output window, operand 1, single buffered']
    %19 = vsyncpa [#allocation4], 0
    %20 = vsyncpa [#allocation7], 0
    %21 = vsyncpa [#allocation10], 0
    %22 = vsyncpa [#allocation5], 0
    loop: start=0, step=1, limit=4
    $region2: #{luong_attn_decoder_step.2} parent=1 // loop_pre_header
      _
    $region3: #{luong_attn_decoder_step.2} parent=1 // loop_header
      %s24 = sphi 0, %s28
      %p25 = scmp.ge.s32.totalorder %s24, 4
      %s32 = sphi 0, %s32
      %s34 = sphi 0, %s32
      %s35 = sphi 0, %s34
      %s49 = sphi 0, %s35
      %s53 = sphi 0, %s53
      %s55 = sphi 0, %s53
      %s56 = sphi 0, %s55
      %s70 = sphi 0, %s56
      %s74 = sphi 0, %s74
      %s76 = sphi 0, %s74
      %s77 = sphi 0, %s76
      %s91 = sphi 0, %s77
      %s95 = sphi 0, %s95
      %s97 = sphi 0, %s95
      %s98 = sphi 0, %s97
      %s112 = sphi 0, %s98
      %s116 = sphi 0, %s116
      %s118 = sphi 0, %s116
      %s119 = sphi 0, %s118
      %s133 = sphi 0, %s119
      %s137 = sphi 0, %s137
      %s139 = sphi 0, %s137
      %s140 = sphi 0, %s139
      %s154 = sphi 0, %s140
      %s158 = sphi 0, %s158
      %s160 = sphi 0, %s158
      %s161 = sphi 0, %s160
      %s175 = sphi 0, %s161
      %s179 = sphi 0, %s179
      %s181 = sphi 0, %s179
      %s182 = sphi 0, %s181
      %s196 = sphi 0, %s182
      %s200 = sphi 0, %s200
      %s202 = sphi 0, %s200
      %s203 = sphi 0, %s202
      %s217 = sphi 0, %s203
      %s221 = sphi 0, %s221
      %s223 = sphi 0, %s221
      %s224 = sphi 0, %s223
      %s238 = sphi 0, %s224
      %s244 = sphi 0, %s246
      %s247 = sphi 0, %s244
      %s248 = sphi 0, %s247
      %s264 = sphi 0, %s248
      %s270 = sphi 0, %s272
      %s273 = sphi 0, %s270
      %s274 = sphi 0, %s273
      %s290 = sphi 0, %s274
      %s296 = sphi 0, %s298
      %s299 = sphi 0, %s296
      %s300 = sphi 0, %s299
      %s316 = sphi 0, %s300
      %s320 = sphi 0, %s320
      %s322 = sphi 0, %s320
      %s323 = sphi 0, %s322
      %s337 = sphi 0, %s323
    $region4: #{luong_attn_decoder_step.2} parent=1 // loop_header_branch
      %27 = sbr.rel (%p25) target = $region8
    $region5: #{luong_attn_decoder_step.2} parent=1 // loop_body
      %s29 = ssub.s32 %s24, 1
      %s30 = ssub.s32 %s24, 2
      %s31 = sadd.s32 %s24, 1
      %s33 = sadd.s32 %s32, 1
      %p36 = scmp.eq.s32.totalorder %s24, 1
      %p37 = scmp.ne.s32.totalorder %s32, %s34
      %p38 = scmp.eq.s32.totalorder %s24, 0
      %p39 = por %p37, %p38
      %p40 = scmp.ne.s32.totalorder %s32, %s34
      %p41 = scmp.eq.s32.totalorder %s29, 1
      %p42 = por %p40, %p41
      %p43 = scmp.ne.s32.totalorder %s34, %s35
      %p44 = scmp.eq.s32.totalorder %s29, 0
      %p45 = por %p43, %p44
      %p46 = scmp.ne.s32.totalorder %s34, %s35
      %p47 = scmp.eq.s32.totalorder %s30, 1
      %p48 = por %p46, %p47
      %p50 = scmp.ne.s32.totalorder %s35, %s49
      %p51 = scmp.eq.s32.totalorder %s30, 0
      %p52 = por %p50, %p51
      %s54 = sadd.s32 %s53, 1
      %p57 = scmp.eq.s32.totalorder %s24, 1
      %p58 = scmp.ne.s32.totalorder %s53, %s55
      %p59 = scmp.eq.s32.totalorder %s24, 0
      %p60 = por %p58, %p59
      %p61 = scmp.ne.s32.totalorder %s53, %s55
      %p62 = scmp.eq.s32.totalorder %s29, 1
      %p63 = por %p61, %p62
      %p64 = scmp.ne.s32.totalorder %s55, %s56
      %p65 = scmp.eq.s32.totalorder %s29, 0
      %p66 = por %p64, %p65
      %p67 = scmp.ne.s32.totalorder %s55, %s56
      %p68 = scmp.eq.s32.totalorder %s30, 1
      %p69 = por %p67, %p68
      %p71 = scmp.ne.s32.totalorder %s56, %s70
      %p72 = scmp.eq.s32.totalorder %s30, 0
      %p73 = por %p71, %p72
      %s75 = sadd.s32 %s74, 1
      %p78 = scmp.eq.s32.totalorder %s24, 1
      %p79 = scmp.ne.s32.totalorder %s74, %s76
      %p80 = scmp.eq.s32.totalorder %s24, 0
      %p81 = por %p79, %p80
      %p82 = scmp.ne.s32.totalorder %s74, %s76
      %p83 = scmp.eq.s32.totalorder %s29, 1
      %p84 = por %p82, %p83
      %p85 = scmp.ne.s32.totalorder %s76, %s77
      %p86 = scmp.eq.s32.totalorder %s29, 0
      %p87 = por %p85, %p86
      %p88 = scmp.ne.s32.totalorder %s76, %s77
      %p89 = scmp.eq.s32.totalorder %s30, 1
      %p90 = por %p88, %p89
      %p92 = scmp.ne.s32.totalorder %s77, %s91
      %p93 = scmp.eq.s32.totalorder %s30, 0
      %p94 = por %p92, %p93
      %s96 = sadd.s32 %s95, 1
      %p99 = scmp.eq.s32.totalorder %s24, 1
      %p100 = scmp.ne.s32.totalorder %s95, %s97
      %p101 = scmp.eq.s32.totalorder %s24, 0
      %p102 = por %p100, %p101
      %p103 = scmp.ne.s32.totalorder %s95, %s97
      %p104 = scmp.eq.s32.totalorder %s29, 1
      %p105 = por %p103, %p104
      %p106 = scmp.ne.s32.totalorder %s97, %s98
      %p107 = scmp.eq.s32.totalorder %s29, 0
      %p108 = por %p106, %p107
      %p109 = scmp.ne.s32.totalorder %s97, %s98
      %p110 = scmp.eq.s32.totalorder %s30, 1
      %p111 = por %p109, %p110
      %p113 = scmp.ne.s32.totalorder %s98, %s112
      %p114 = scmp.eq.s32.totalorder %s30, 0
      %p115 = por %p113, %p114
      %s117 = sadd.s32 %s116, 1
      %p120 = scmp.eq.s32.totalorder %s24, 1
      %p121 = scmp.ne.s32.totalorder %s116, %s118
      %p122 = scmp.eq.s32.totalorder %s24, 0
      %p123 = por %p121, %p122
      %p124 = scmp.ne.s32.totalorder %s116, %s118
      %p125 = scmp.eq.s32.totalorder %s29, 1
      %p126 = por %p124, %p125
      %p127 = scmp.ne.s32.totalorder %s118, %s119
      %p128 = scmp.eq.s32.totalorder %s29, 0
      %p129 = por %p127, %p128
      %p130 = scmp.ne.s32.totalorder %s118, %s119
      %p131 = scmp.eq.s32.totalorder %s30, 1
      %p132 = por %p130, %p131
      %p134 = scmp.ne.s32.totalorder %s119, %s133
      %p135 = scmp.eq.s32.totalorder %s30, 0
      %p136 = por %p134, %p135
      %s138 = sadd.s32 %s137, 1
      %p141 = scmp.eq.s32.totalorder %s24, 1
      %p142 = scmp.ne.s32.totalorder %s137, %s139
      %p143 = scmp.eq.s32.totalorder %s24, 0
      %p144 = por %p142, %p143
      %p145 = scmp.ne.s32.totalorder %s137, %s139
      %p146 = scmp.eq.s32.totalorder %s29, 1
      %p147 = por %p145, %p146
      %p148 = scmp.ne.s32.totalorder %s139, %s140
      %p149 = scmp.eq.s32.totalorder %s29, 0
      %p150 = por %p148, %p149
      %p151 = scmp.ne.s32.totalorder %s139, %s140
      %p152 = scmp.eq.s32.totalorder %s30, 1
      %p153 = por %p151, %p152
      %p155 = scmp.ne.s32.totalorder %s140, %s154
      %p156 = scmp.eq.s32.totalorder %s30, 0
      %p157 = por %p155, %p156
      %s159 = sadd.s32 %s158, 1
      %p162 = scmp.eq.s32.totalorder %s24, 1
      %p163 = scmp.ne.s32.totalorder %s158, %s160
      %p164 = scmp.eq.s32.totalorder %s24, 0
      %p165 = por %p163, %p164
      %p166 = scmp.ne.s32.totalorder %s158, %s160
      %p167 = scmp.eq.s32.totalorder %s29, 1
      %p168 = por %p166, %p167
      %p169 = scmp.ne.s32.totalorder %s160, %s161
      %p170 = scmp.eq.s32.totalorder %s29, 0
      %p171 = por %p169, %p170
      %p172 = scmp.ne.s32.totalorder %s160, %s161
      %p173 = scmp.eq.s32.totalorder %s30, 1
      %p174 = por %p172, %p173
      %p176 = scmp.ne.s32.totalorder %s161, %s175
      %p177 = scmp.eq.s32.totalorder %s30, 0
      %p178 = por %p176, %p177
      %s180 = sadd.s32 %s179, 1
      %p183 = scmp.eq.s32.totalorder %s24, 1
      %p184 = scmp.ne.s32.totalorder %s179, %s181
      %p185 = scmp.eq.s32.totalorder %s24, 0
      %p186 = por %p184, %p185
      %p187 = scmp.ne.s32.totalorder %s179, %s181
      %p188 = scmp.eq.s32.totalorder %s29, 1
      %p189 = por %p187, %p188
      %p190 = scmp.ne.s32.totalorder %s181, %s182
      %p191 = scmp.eq.s32.totalorder %s29, 0
      %p192 = por %p190, %p191
      %p193 = scmp.ne.s32.totalorder %s181, %s182
      %p194 = scmp.eq.s32.totalorder %s30, 1
      %p195 = por %p193, %p194
      %p197 = scmp.ne.s32.totalorder %s182, %s196
      %p198 = scmp.eq.s32.totalorder %s30, 0
      %p199 = por %p197, %p198
      %s201 = sadd.s32 %s200, 1
      %p204 = scmp.eq.s32.totalorder %s24, 1
      %p205 = scmp.ne.s32.totalorder %s200, %s202
      %p206 = scmp.eq.s32.totalorder %s24, 0
      %p207 = por %p205, %p206
      %p208 = scmp.ne.s32.totalorder %s200, %s202
      %p209 = scmp.eq.s32.totalorder %s29, 1
      %p210 = por %p208, %p209
      %p211 = scmp.ne.s32.totalorder %s202, %s203
      %p212 = scmp.eq.s32.totalorder %s29, 0
      %p213 = por %p211, %p212
      %p214 = scmp.ne.s32.totalorder %s202, %s203
      %p215 = scmp.eq.s32.totalorder %s30, 1
      %p216 = por %p214, %p215
      %p218 = scmp.ne.s32.totalorder %s203, %s217
      %p219 = scmp.eq.s32.totalorder %s30, 0
      %p220 = por %p218, %p219
      %s222 = sadd.s32 %s221, 1
      %p225 = scmp.eq.s32.totalorder %s24, 1
      %p226 = scmp.ne.s32.totalorder %s221, %s223
      %p227 = scmp.eq.s32.totalorder %s24, 0
      %p228 = por %p226, %p227
      %p229 = scmp.ne.s32.totalorder %s221, %s223
      %p230 = scmp.eq.s32.totalorder %s29, 1
      %p231 = por %p229, %p230
      %p232 = scmp.ne.s32.totalorder %s223, %s224
      %p233 = scmp.eq.s32.totalorder %s29, 0
      %p234 = por %p232, %p233
      %p235 = scmp.ne.s32.totalorder %s223, %s224
      %p236 = scmp.eq.s32.totalorder %s30, 1
      %p237 = por %p235, %p236
      %p239 = scmp.ne.s32.totalorder %s224, %s238
      %p240 = scmp.eq.s32.totalorder %s30, 0
      %p241 = por %p239, %p240
      %s242 = ssub.s32 %s24, %s31
      %p243 = scmp.eq.s32.totalorder %s242, 0
      %s245 = sadd.s32 %s244, 1
      %s246 = scalar_select %p243, %s244, %s245
      %p249 = pneg %p243
      %p250 = scmp.eq.s32.totalorder %s24, 1
      %p251 = por %p249, %p250
      %p252 = scmp.ne.s32.totalorder %s244, %s247
      %p253 = scmp.eq.s32.totalorder %s24, 0
      %p254 = por %p252, %p253
      %p255 = scmp.ne.s32.totalorder %s244, %s247
      %p256 = scmp.eq.s32.totalorder %s29, 1
      %p257 = por %p255, %p256
      %p258 = scmp.ne.s32.totalorder %s247, %s248
      %p259 = scmp.eq.s32.totalorder %s29, 0
      %p260 = por %p258, %p259
      %p261 = scmp.ne.s32.totalorder %s247, %s248
      %p262 = scmp.eq.s32.totalorder %s30, 1
      %p263 = por %p261, %p262
      %p265 = scmp.ne.s32.totalorder %s248, %s264
      %p266 = scmp.eq.s32.totalorder %s30, 0
      %p267 = por %p265, %p266
      %s268 = ssub.s32 %s24, %s31
      %p269 = scmp.eq.s32.totalorder %s268, 0
      %s271 = sadd.s32 %s270, 1
      %s272 = scalar_select %p269, %s270, %s271
      %p275 = pneg %p269
      %p276 = scmp.eq.s32.totalorder %s24, 1
      %p277 = por %p275, %p276
      %p278 = scmp.ne.s32.totalorder %s270, %s273
      %p279 = scmp.eq.s32.totalorder %s24, 0
      %p280 = por %p278, %p279
      %p281 = scmp.ne.s32.totalorder %s270, %s273
      %p282 = scmp.eq.s32.totalorder %s29, 1
      %p283 = por %p281, %p282
      %p284 = scmp.ne.s32.totalorder %s273, %s274
      %p285 = scmp.eq.s32.totalorder %s29, 0
      %p286 = por %p284, %p285
      %p287 = scmp.ne.s32.totalorder %s273, %s274
      %p288 = scmp.eq.s32.totalorder %s30, 1
      %p289 = por %p287, %p288
      %p291 = scmp.ne.s32.totalorder %s274, %s290
      %p292 = scmp.eq.s32.totalorder %s30, 0
      %p293 = por %p291, %p292
      %s294 = ssub.s32 %s24, %s31
      %p295 = scmp.eq.s32.totalorder %s294, 0
      %s297 = sadd.s32 %s296, 1
      %s298 = scalar_select %p295, %s296, %s297
      %p301 = pneg %p295
      %p302 = scmp.eq.s32.totalorder %s24, 1
      %p303 = por %p301, %p302
      %p304 = scmp.ne.s32.totalorder %s296, %s299
      %p305 = scmp.eq.s32.totalorder %s24, 0
      %p306 = por %p304, %p305
      %p307 = scmp.ne.s32.totalorder %s296, %s299
      %p308 = scmp.eq.s32.totalorder %s29, 1
      %p309 = por %p307, %p308
      %p310 = scmp.ne.s32.totalorder %s299, %s300
      %p311 = scmp.eq.s32.totalorder %s29, 0
      %p312 = por %p310, %p311
      %p313 = scmp.ne.s32.totalorder %s299, %s300
      %p314 = scmp.eq.s32.totalorder %s30, 1
      %p315 = por %p313, %p314
      %p317 = scmp.ne.s32.totalorder %s300, %s316
      %p318 = scmp.eq.s32.totalorder %s30, 0
      %p319 = por %p317, %p318
      %s321 = sadd.s32 %s320, 1
      %p324 = scmp.eq.s32.totalorder %s24, 1
      %p325 = scmp.ne.s32.totalorder %s320, %s322
      %p326 = scmp.eq.s32.totalorder %s24, 0
      %p327 = por %p325, %p326
      %p328 = scmp.ne.s32.totalorder %s320, %s322
      %p329 = scmp.eq.s32.totalorder %s29, 1
      %p330 = por %p328, %p329
      %p331 = scmp.ne.s32.totalorder %s322, %s323
      %p332 = scmp.eq.s32.totalorder %s29, 0
      %p333 = por %p331, %p332
      %p334 = scmp.ne.s32.totalorder %s322, %s323
      %p335 = scmp.eq.s32.totalorder %s30, 1
      %p336 = por %p334, %p335
      %p338 = scmp.ne.s32.totalorder %s323, %s337
      %p339 = scmp.eq.s32.totalorder %s30, 0
      %p340 = por %p338, %p339
      %p341 = scmp.le.s32.totalorder 1, %s24
      %p342 = scmp.lt.s32.totalorder %s24, 3
      %p343 = pnand %p341, %p342
      %p344 = pneg %p343
      // Predicated region
      $region9: #{luong_attn_decoder_step.2} parent=5 // pred_check
        _
      $region10: #{luong_attn_decoder_step.2} parent=5 // pred_check_branch
        %346 = sbr.rel (%p343) target = $region12
      $region11: #{luong_attn_decoder_step.2} parent=5 // pred_region
        %s347 = ssub.s32 %s24, 1
        // Predicated region
        $region13: #{luong_attn_decoder_step.2} parent=11 // pred_check
          %p348 = pneg %p45
        $region14: #{luong_attn_decoder_step.2} parent=11 // pred_check_branch
          %350 = sbr.rel (%p348) target = $region16
        $region15: #{luong_attn_decoder_step.2} parent=11 // pred_region
          _
        $region16: #{luong_attn_decoder_step.2} parent=11 // pred_fallthru
          _
        // Predicated region
        $region17: #{luong_attn_decoder_step.2} parent=11 // pred_check
          %p351 = pneg %p66
        $region18: #{luong_attn_decoder_step.2} parent=11 // pred_check_branch
          %353 = sbr.rel (%p351) target = $region20
        $region19: #{luong_attn_decoder_step.2} parent=11 // pred_region
          _
        $region20: #{luong_attn_decoder_step.2} parent=11 // pred_fallthru
          _
        // Predicated region
        $region21: #{luong_attn_decoder_step.2} parent=11 // pred_check
          %p354 = pneg %p87
        $region22: #{luong_attn_decoder_step.2} parent=11 // pred_check_branch
          %356 = sbr.rel (%p354) target = $region24
        $region23: #{luong_attn_decoder_step.2} parent=11 // pred_region
          _
        $region24: #{luong_attn_decoder_step.2} parent=11 // pred_fallthru
          _
        // Predicated region
        $region25: #{luong_attn_decoder_step.2} parent=11 // pred_check
          %p357 = pneg %p108
        $region26: #{luong_attn_decoder_step.2} parent=11 // pred_check_branch
          %359 = sbr.rel (%p357) target = $region28
        $region27: #{luong_attn_decoder_step.2} parent=11 // pred_region
          %361 = vsyncadd [#allocation4], 0
          %s362 = sshll.u32 %s3, 4
          %s363 = int_to_ptr.hbm [resolvable:$true] %s362
          %s364 = sshll.u32 [#allocation3], 4
          %s365 = int_to_ptr.vmem [resolvable:$true] %s364
          %370 = dma.hbm_to_vmem [thread:$0]  %s363, 3072, %s365, [#allocation4], 192, 192, 12
        $region28: #{luong_attn_decoder_step.2} parent=11 // pred_fallthru
          _
        // Predicated region
        $region29: #{luong_attn_decoder_step.2} parent=11 // pred_check
          %p371 = pneg %p129
        $region30: #{luong_attn_decoder_step.2} parent=11 // pred_check_branch
          %373 = sbr.rel (%p371) target = $region32
        $region31: #{luong_attn_decoder_step.2} parent=11 // pred_region
          %375 = vsyncadd [#allocation7], 0
          %s376 = sshll.u32 %s4, 4
          %s377 = int_to_ptr.hbm [resolvable:$true] %s376
          %s378 = sshll.u32 [#allocation6], 4
          %s379 = int_to_ptr.vmem [resolvable:$true] %s378
          %384 = dma.hbm_to_vmem [thread:$0]  %s377, 3072, %s379, [#allocation7], 192, 192, 12
        $region32: #{luong_attn_decoder_step.2} parent=11 // pred_fallthru
          _
        // Predicated region
        $region33: #{luong_attn_decoder_step.2} parent=11 // pred_check
          %p385 = pneg %p150
        $region34: #{luong_attn_decoder_step.2} parent=11 // pred_check_branch
          %387 = sbr.rel (%p385) target = $region36
        $region35: #{luong_attn_decoder_step.2} parent=11 // pred_region
          _
        $region36: #{luong_attn_decoder_step.2} parent=11 // pred_fallthru
          _
        // Predicated region
        $region37: #{luong_attn_decoder_step.2} parent=11 // pred_check
          %p388 = pneg %p171
        $region38: #{luong_attn_decoder_step.2} parent=11 // pred_check_branch
          %390 = sbr.rel (%p388) target = $region40
        $region39: #{luong_attn_decoder_step.2} parent=11 // pred_region
          _
        $region40: #{luong_attn_decoder_step.2} parent=11 // pred_fallthru
          _
        // Predicated region
        $region41: #{luong_attn_decoder_step.2} parent=11 // pred_check
          %p391 = pneg %p192
        $region42: #{luong_attn_decoder_step.2} parent=11 // pred_check_branch
          %393 = sbr.rel (%p391) target = $region44
        $region43: #{luong_attn_decoder_step.2} parent=11 // pred_region
          %395 = vsyncadd [#allocation7], 0
          %s396 = sshll.u32 %s7, 4
          %s397 = int_to_ptr.hbm [resolvable:$true] %s396
          %s398 = sshll.u32 [#allocation8], 4
          %s399 = int_to_ptr.vmem [resolvable:$true] %s398
          %404 = dma.hbm_to_vmem [thread:$0]  %s397, 1024, %s399, [#allocation7], 64, 64, 4
        $region44: #{luong_attn_decoder_step.2} parent=11 // pred_fallthru
          _
        // Predicated region
        $region45: #{luong_attn_decoder_step.2} parent=11 // pred_check
          %p405 = pneg %p213
        $region46: #{luong_attn_decoder_step.2} parent=11 // pred_check_branch
          %407 = sbr.rel (%p405) target = $region48
        $region47: #{luong_attn_decoder_step.2} parent=11 // pred_region
          %409 = vsyncadd [#allocation10], 0
          %s410 = sshll.u32 %s8, 4
          %s411 = int_to_ptr.hbm [resolvable:$true] %s410
          %s412 = sshll.u32 [#allocation9], 4
          %s413 = int_to_ptr.vmem [resolvable:$true] %s412
          %418 = dma.hbm_to_vmem [thread:$0]  %s411, 1024, %s413, [#allocation10], 64, 64, 4
        $region48: #{luong_attn_decoder_step.2} parent=11 // pred_fallthru
          _
        // Predicated region
        $region49: #{luong_attn_decoder_step.2} parent=11 // pred_check
          %p419 = pneg %p234
        $region50: #{luong_attn_decoder_step.2} parent=11 // pred_check_branch
          %421 = sbr.rel (%p419) target = $region52
        $region51: #{luong_attn_decoder_step.2} parent=11 // pred_region
          _
        $region52: #{luong_attn_decoder_step.2} parent=11 // pred_fallthru
          _
      $region12: #{luong_attn_decoder_step.2} parent=5 // pred_fallthru
        _
      %p422 = scmp.lt.s32.totalorder %s24, 2
      // Predicated region
      $region53: #{luong_attn_decoder_step.2} parent=5 // pred_check
        %p423 = pneg %p422
      $region54: #{luong_attn_decoder_step.2} parent=5 // pred_check_branch
        %425 = sbr.rel (%p423) target = $region56
      $region55: #{luong_attn_decoder_step.2} parent=5 // pred_region
        // Predicated region
        $region57: #{luong_attn_decoder_step.2} parent=55 // pred_check
          %p426 = pneg %p254
        $region58: #{luong_attn_decoder_step.2} parent=55 // pred_check_branch
          %428 = sbr.rel (%p426) target = $region60
        $region59: #{luong_attn_decoder_step.2} parent=55 // pred_region
          %s429 = sand.u32 %s24, 1
          %s430 = scalar_lea.sflag [#allocation4], %s429
          %s431 = sand.u32 %s244, 1
          %s432 = smul.addr %s431, 64
          %s433 = scalar_lea.vmem [#allocation11], %s432
          %435 = vsyncadd %s430, 0
          %s436 = smul.addr %s24, 4
          %s437 = scalar_lea.hbm %s10, %s436
          %s438 = sshll.u32 %s437, 4
          %s439 = int_to_ptr.hbm [resolvable:$true] %s438
          %s440 = sshll.u32 %s433, 4
          %s441 = int_to_ptr.vmem [resolvable:$true] %s440
          %446 = dma.hbm_to_vmem [thread:$0]  %s439, 1024, %s441, %s430, 128, 64, 4
        $region60: #{luong_attn_decoder_step.2} parent=55 // pred_fallthru
          _
        // Predicated region
        $region61: #{luong_attn_decoder_step.2} parent=55 // pred_check
          %p447 = pneg %p280
        $region62: #{luong_attn_decoder_step.2} parent=55 // pred_check_branch
          %449 = sbr.rel (%p447) target = $region64
        $region63: #{luong_attn_decoder_step.2} parent=55 // pred_region
          %p450 = scmp.lt.s32.totalorder %s24, 1
          %s451 = scalar_select %p450, %s24, 1
          %s452 = scalar_lea.vmem %s11, %s451
        $region64: #{luong_attn_decoder_step.2} parent=55 // pred_fallthru
          _
      $region56: #{luong_attn_decoder_step.2} parent=5 // pred_fallthru
        _
      %p453 = scmp.le.s32.totalorder 1, %s24
      %p454 = scmp.lt.s32.totalorder %s24, 3
      %p455 = pnand %p453, %p454
      %p456 = pneg %p455
      // Predicated region
      $region65: #{luong_attn_decoder_step.2} parent=5 // pred_check
        _
      $region66: #{luong_attn_decoder_step.2} parent=5 // pred_check_branch
        %458 = sbr.rel (%p455) target = $region68
      $region67: #{luong_attn_decoder_step.2} parent=5 // pred_region
        %s459 = ssub.s32 %s24, 1
        // Predicated region
        $region69: #{luong_attn_decoder_step.2} parent=67 // pred_check
          %p460 = pneg %p108
        $region70: #{luong_attn_decoder_step.2} parent=67 // pred_check_branch
          %462 = sbr.rel (%p460) target = $region72
        $region71: #{luong_attn_decoder_step.2} parent=67 // pred_region
          %464 = dma.done [#allocation4], 3072
        $region72: #{luong_attn_decoder_step.2} parent=67 // pred_fallthru
          _
        // Predicated region
        $region73: #{luong_attn_decoder_step.2} parent=67 // pred_check
          %p465 = pneg %p129
        $region74: #{luong_attn_decoder_step.2} parent=67 // pred_check_branch
          %467 = sbr.rel (%p465) target = $region76
        $region75: #{luong_attn_decoder_step.2} parent=67 // pred_region
          %469 = dma.done [#allocation7], 3072
        $region76: #{luong_attn_decoder_step.2} parent=67 // pred_fallthru
          _
        // Predicated region
        $region77: #{luong_attn_decoder_step.2} parent=67 // pred_check
          %p470 = pneg %p192
        $region78: #{luong_attn_decoder_step.2} parent=67 // pred_check_branch
          %472 = sbr.rel (%p470) target = $region80
        $region79: #{luong_attn_decoder_step.2} parent=67 // pred_region
          %474 = dma.done [#allocation7], 1024
        $region80: #{luong_attn_decoder_step.2} parent=67 // pred_fallthru
          _
        // Predicated region
        $region81: #{luong_attn_decoder_step.2} parent=67 // pred_check
          %p475 = pneg %p213
        $region82: #{luong_attn_decoder_step.2} parent=67 // pred_check_branch
          %477 = sbr.rel (%p475) target = $region84
        $region83: #{luong_attn_decoder_step.2} parent=67 // pred_region
          %479 = dma.done [#allocation10], 1024
        $region84: #{luong_attn_decoder_step.2} parent=67 // pred_fallthru
          _
        %s480 = sand.u32 %s29, 1
        %s481 = scalar_lea.sflag [#allocation4], %s480
        %s482 = sand.u32 %s247, 1
        %s483 = smul.addr %s482, 64
        %s484 = scalar_lea.vmem [#allocation11], %s483
        // Predicated region
        $region85: #{luong_attn_decoder_step.2} parent=67 // pred_check
          %p485 = pneg %p260
        $region86: #{luong_attn_decoder_step.2} parent=67 // pred_check_branch
          %487 = sbr.rel (%p485) target = $region88
        $region87: #{luong_attn_decoder_step.2} parent=67 // pred_region
          %489 = dma.done %s481, 1024
        $region88: #{luong_attn_decoder_step.2} parent=67 // pred_fallthru
          _
        %p490 = pneg %p45
        %p491 = pneg %p42
        %p492 = pneg %p66
        %p493 = pneg %p63
        %p494 = pneg %p87
        %p495 = pneg %p84
        %p496 = pneg %p108
        %p497 = pneg %p105
        %p498 = pneg %p129
        %p499 = pneg %p126
        %p500 = pneg %p150
        %p501 = pneg %p147
        %p502 = pneg %p171
        %p503 = pneg %p168
        %p504 = pneg %p192
        %p505 = pneg %p189
        %p506 = pneg %p213
        %p507 = pneg %p210
        %p508 = pneg %p234
        %p509 = pneg %p231
        %s510 = sand.u32 %s29, 1
        %s511 = scalar_lea.sflag [#allocation4], %s510
        %s512 = sand.u32 %s247, 1
        %s513 = smul.addr %s512, 64
        %s514 = scalar_lea.vmem [#allocation11], %s513
        %p515 = pneg %p260
        %p516 = pneg %p257
        %p517 = scmp.lt.s32.totalorder %s29, 1
        %s518 = scalar_select %p517, %s29, 1
        %s519 = scalar_lea.vmem %s11, %s518
        %p520 = pneg %p286
        %p521 = pneg %p283
        %p522 = pneg %p312
        %p523 = pneg %p309
        %p524 = scmp.lt.s32.totalorder %s29, 1
        %s525 = scalar_select %p524, %s29, 1
        %s526 = smul.addr %s525, 8
        %s527 = scalar_lea.vmem %s12, %s526
        %p528 = pneg %p333
        %p529 = pneg %p330
        %p530 = scmp.lt.s32.totalorder %s29, 1
        %s531 = scalar_select %p530, %s29, 1
        %s532 = scalar_lea.vmem %s11, %s531
        %p533 = scmp.lt.s32.totalorder %s29, 1
        %s534 = scalar_select %p533, %s29, 1
        %s535 = smul.addr %s534, 8
        %s536 = scalar_lea.vmem %s12, %s535
        %p538 = scmp.eq.s32.totalorder %s29, 0
        // Predicated region
        $region89: #{luong_attn_decoder_step.2} parent=67 // pred_check
          %p539 = pneg %p538
        $region90: #{luong_attn_decoder_step.2} parent=67 // pred_check_branch
          %541 = sbr.rel (%p539) target = $region92
        $region91: #{luong_attn_decoder_step.2} parent=67 // pred_region
          %v542 = vld [vmem:[%s0] sm:$0xf]
          %v543 = vld [vmem:[%s1] sm:$0xff]
          %v544 = vld [vmem:[#allocation3] sm:$0xff]
          %v545 = vld [vmem:[#allocation3 + $0x8] sm:$0xf]
          %v546 = vld [vmem:[#allocation3 + $0xc] sm:$0xff]
          %v547 = vld [vmem:[#allocation3 + $0x14] sm:$0xf]
          %v548 = vld [vmem:[#allocation3 + $0x18] sm:$0xff]
          %v549 = vld [vmem:[#allocation3 + $0x20] sm:$0xf]
          %v550 = vld [vmem:[#allocation3 + $0x24] sm:$0xff]
          %v551 = vld [vmem:[#allocation3 + $0x2c] sm:$0xf]
          %v552 = vld [vmem:[#allocation3 + $0x30] sm:$0xff]
          %v553 = vld [vmem:[#allocation3 + $0x38] sm:$0xf]
          %v554 = vld [vmem:[#allocation3 + $0x3c] sm:$0xff]
          %v555 = vld [vmem:[#allocation3 + $0x44] sm:$0xf]
          %v556 = vld [vmem:[#allocation3 + $0x48] sm:$0xff]
          %v557 = vld [vmem:[#allocation3 + $0x50] sm:$0xf]
          %v558 = vld [vmem:[#allocation3 + $0x54] sm:$0xff]
          %v559 = vld [vmem:[#allocation3 + $0x5c] sm:$0xf]
          %v560 = vld [vmem:[#allocation3 + $0x60] sm:$0xff]
          %v561 = vld [vmem:[#allocation3 + $0x68] sm:$0xf]
          %v562 = vld [vmem:[#allocation3 + $0x6c] sm:$0xff]
          %v563 = vld [vmem:[#allocation3 + $0x74] sm:$0xf]
          %v564 = vld [vmem:[#allocation3 + $0x78] sm:$0xff]
          %v565 = vld [vmem:[#allocation3 + $0x80] sm:$0xf]
          %v566 = vld [vmem:[#allocation3 + $0x84] sm:$0xff]
          %v567 = vld [vmem:[#allocation3 + $0x8c] sm:$0xf]
          %v568 = vld [vmem:[#allocation3 + $0x90] sm:$0xff]
          %v569 = vld [vmem:[#allocation3 + $0x98] sm:$0xf]
          %v570 = vld [vmem:[#allocation3 + $0x9c] sm:$0xff]
          %v571 = vld [vmem:[#allocation3 + $0xa4] sm:$0xf]
          %v572 = vld [vmem:[#allocation3 + $0xa8] sm:$0xff]
          %v573 = vld [vmem:[#allocation3 + $0xb0] sm:$0xf]
          %v574 = vld [vmem:[#allocation3 + $0xb4] sm:$0xff]
          %v575 = vld [vmem:[#allocation3 + $0xbc] sm:$0xf]
          %v576 = vld [vmem:[%s5] sm:$0x7]
          %v578 = vperm.slane %v576, 0
          %v579 = vperm.slane %v576, 1
          %v580 = vperm.slane %v576, 2
          %v616 = vunpack.c.l.b16 %v544
          %v617 = vunpack.c.h.b16 %v544
          %v618 = vunpack.c.l.b16 %v545
          %v619 = vunpack.c.l.b16 %v546
          %v620 = vunpack.c.h.b16 %v546
          %v621 = vunpack.c.l.b16 %v547
          %v622 = vunpack.c.l.b16 %v548
          %v623 = vunpack.c.h.b16 %v548
          %v624 = vunpack.c.l.b16 %v549
          %v625 = vunpack.c.l.b16 %v550
          %v626 = vunpack.c.h.b16 %v550
          %v627 = vunpack.c.l.b16 %v551
          %v628 = vunpack.c.l.b16 %v552
          %v629 = vunpack.c.h.b16 %v552
          %v630 = vunpack.c.l.b16 %v553
          %v631 = vunpack.c.l.b16 %v554
          %v632 = vunpack.c.h.b16 %v554
          %v633 = vunpack.c.l.b16 %v555
          %v634 = vunpack.c.l.b16 %v556
          %v635 = vunpack.c.h.b16 %v556
          %v636 = vunpack.c.l.b16 %v557
          %v637 = vunpack.c.l.b16 %v558
          %v638 = vunpack.c.h.b16 %v558
          %v639 = vunpack.c.l.b16 %v559
          %v640 = vunpack.c.l.b16 %v560
          %v641 = vunpack.c.h.b16 %v560
          %v642 = vunpack.c.l.b16 %v561
          %v643 = vunpack.c.l.b16 %v562
          %v644 = vunpack.c.h.b16 %v562
          %v645 = vunpack.c.l.b16 %v563
          %v646 = vunpack.c.l.b16 %v564
          %v647 = vunpack.c.h.b16 %v564
          %v648 = vunpack.c.l.b16 %v565
          %v649 = vunpack.c.l.b16 %v566
          %v650 = vunpack.c.h.b16 %v566
          %v651 = vunpack.c.l.b16 %v567
          %v652 = vunpack.c.l.b16 %v568
          %v653 = vunpack.c.h.b16 %v568
          %v654 = vunpack.c.l.b16 %v569
          %v655 = vunpack.c.l.b16 %v570
          %v656 = vunpack.c.h.b16 %v570
          %v657 = vunpack.c.l.b16 %v571
          %v658 = vunpack.c.l.b16 %v572
          %v659 = vunpack.c.h.b16 %v572
          %v660 = vunpack.c.l.b16 %v573
          %v661 = vunpack.c.l.b16 %v574
          %v662 = vunpack.c.h.b16 %v574
          %v663 = vunpack.c.l.b16 %v575
          %v664 = vpack.c.b16 %v619, %v616
          %v665 = vpack.c.b16 %v620, %v617
          %v666 = vpack.c.b16 %v621, %v618
          %v667 = vpack.c.b16 %v625, %v622
          %v668 = vpack.c.b16 %v626, %v623
          %v669 = vpack.c.b16 %v627, %v624
          %v670 = vpack.c.b16 %v631, %v628
          %v671 = vpack.c.b16 %v632, %v629
          %v672 = vpack.c.b16 %v633, %v630
          %v673 = vpack.c.b16 %v637, %v634
          %v674 = vpack.c.b16 %v638, %v635
          %v675 = vpack.c.b16 %v639, %v636
          %v676 = vpack.c.b16 %v643, %v640
          %v677 = vpack.c.b16 %v644, %v641
          %v678 = vpack.c.b16 %v645, %v642
          %v679 = vpack.c.b16 %v649, %v646
          %v680 = vpack.c.b16 %v650, %v647
          %v681 = vpack.c.b16 %v651, %v648
          %v682 = vpack.c.b16 %v655, %v652
          %v683 = vpack.c.b16 %v656, %v653
          %v684 = vpack.c.b16 %v657, %v654
          %v685 = vpack.c.b16 %v661, %v658
          %v686 = vpack.c.b16 %v662, %v659
          %v687 = vpack.c.b16 %v663, %v660
          %712 = vmatpush.bf16.msra.mxu0 %v685
          %713 = vmatpush.bf16.msra.mxu0 %v682
          %714 = vmatpush.bf16.msra.mxu0 %v679
          %715 = vmatpush.bf16.msra.mxu0 %v676
          %716 = vmatpush.bf16.msra.mxu0 %v673
          %717 = vmatpush.bf16.msra.mxu0 %v670
          %718 = vmatpush.bf16.msra.mxu0 %v667
          %719 = vmatpush.bf16.msra.mxu0 %v664
          %720 = vmatmul.bf16.gmra.mxu0 %v542
          %v721 = vpop.f32.mrf.mxu0
          %v722 = vadd.f32 %v578, %v721
          %v723 = vpop.f32.mrf.mxu0
          %724 = vdwg.mxu0
          %725 = vmatpush.bf16.msra.mxu0 %v686
          %726 = vmatpush.bf16.msra.mxu0 %v683
          %727 = vmatpush.bf16.msra.mxu0 %v680
          %728 = vmatpush.bf16.msra.mxu0 %v677
          %729 = vmatpush.bf16.msra.mxu0 %v674
          %730 = vmatpush.bf16.msra.mxu0 %v671
          %731 = vmatpush.bf16.msra.mxu0 %v668
          %732 = vmatpush.bf16.msra.mxu0 %v665
          %733 = vmatmul.bf16.gmra.mxu0 %v542
          %v734 = vpop.f32.mrf.mxu0
          %v735 = vadd.f32 %v579, %v734
          %v736 = vpop.f32.mrf.mxu0
          %737 = vdwg.mxu0
          %738 = vmatpush.bf16.msra.mxu0 %v687
          %739 = vmatpush.bf16.msra.mxu0 %v684
          %740 = vmatpush.bf16.msra.mxu0 %v681
          %741 = vmatpush.bf16.msra.mxu0 %v678
          %742 = vmatpush.bf16.msra.mxu0 %v675
          %743 = vmatpush.bf16.msra.mxu0 %v672
          %744 = vmatpush.bf16.msra.mxu0 %v669
          %745 = vmatpush.bf16.msra.mxu0 %v666
          %746 = vmatmul.bf16.gmra.mxu0 %v542
          %v747 = vpop.f32.mrf.mxu0
          %v748 = vadd.f32 %v580, %v747
          %v749 = vpop.f32.mrf.mxu0
          %750 = vdwg.mxu0
          %v751 = vpack.c.bf16 %v543, %v543
          %v752 = vld [vmem:[#allocation6] sm:$0xff]
          %v753 = vld [vmem:[#allocation6 + $0x8] sm:$0xf]
          %v754 = vld [vmem:[#allocation6 + $0xc] sm:$0xff]
          %v755 = vld [vmem:[#allocation6 + $0x14] sm:$0xf]
          %v756 = vld [vmem:[#allocation6 + $0x18] sm:$0xff]
          %v757 = vld [vmem:[#allocation6 + $0x20] sm:$0xf]
          %v758 = vld [vmem:[#allocation6 + $0x24] sm:$0xff]
          %v759 = vld [vmem:[#allocation6 + $0x2c] sm:$0xf]
          %v760 = vld [vmem:[#allocation6 + $0x30] sm:$0xff]
          %v761 = vld [vmem:[#allocation6 + $0x38] sm:$0xf]
          %v762 = vld [vmem:[#allocation6 + $0x3c] sm:$0xff]
          %v763 = vld [vmem:[#allocation6 + $0x44] sm:$0xf]
          %v764 = vld [vmem:[#allocation6 + $0x48] sm:$0xff]
          %v765 = vld [vmem:[#allocation6 + $0x50] sm:$0xf]
          %v766 = vld [vmem:[#allocation6 + $0x54] sm:$0xff]
          %v767 = vld [vmem:[#allocation6 + $0x5c] sm:$0xf]
          %v768 = vld [vmem:[#allocation6 + $0x60] sm:$0xff]
          %v769 = vld [vmem:[#allocation6 + $0x68] sm:$0xf]
          %v770 = vld [vmem:[#allocation6 + $0x6c] sm:$0xff]
          %v771 = vld [vmem:[#allocation6 + $0x74] sm:$0xf]
          %v772 = vld [vmem:[#allocation6 + $0x78] sm:$0xff]
          %v773 = vld [vmem:[#allocation6 + $0x80] sm:$0xf]
          %v774 = vld [vmem:[#allocation6 + $0x84] sm:$0xff]
          %v775 = vld [vmem:[#allocation6 + $0x8c] sm:$0xf]
          %v776 = vld [vmem:[#allocation6 + $0x90] sm:$0xff]
          %v777 = vld [vmem:[#allocation6 + $0x98] sm:$0xf]
          %v778 = vld [vmem:[#allocation6 + $0x9c] sm:$0xff]
          %v779 = vld [vmem:[#allocation6 + $0xa4] sm:$0xf]
          %v780 = vld [vmem:[#allocation6 + $0xa8] sm:$0xff]
          %v781 = vld [vmem:[#allocation6 + $0xb0] sm:$0xf]
          %v782 = vld [vmem:[#allocation6 + $0xb4] sm:$0xff]
          %v783 = vld [vmem:[#allocation6 + $0xbc] sm:$0xf]
          %v784 = vld [vmem:[%s6] sm:$0x7]
          %v786 = vperm.slane %v784, 0
          %v787 = vperm.slane %v784, 1
          %v788 = vperm.slane %v784, 2
          %v824 = vunpack.c.l.b16 %v752
          %v825 = vunpack.c.h.b16 %v752
          %v826 = vunpack.c.l.b16 %v753
          %v827 = vunpack.c.l.b16 %v754
          %v828 = vunpack.c.h.b16 %v754
          %v829 = vunpack.c.l.b16 %v755
          %v830 = vunpack.c.l.b16 %v756
          %v831 = vunpack.c.h.b16 %v756
          %v832 = vunpack.c.l.b16 %v757
          %v833 = vunpack.c.l.b16 %v758
          %v834 = vunpack.c.h.b16 %v758
          %v835 = vunpack.c.l.b16 %v759
          %v836 = vunpack.c.l.b16 %v760
          %v837 = vunpack.c.h.b16 %v760
          %v838 = vunpack.c.l.b16 %v761
          %v839 = vunpack.c.l.b16 %v762
          %v840 = vunpack.c.h.b16 %v762
          %v841 = vunpack.c.l.b16 %v763
          %v842 = vunpack.c.l.b16 %v764
          %v843 = vunpack.c.h.b16 %v764
          %v844 = vunpack.c.l.b16 %v765
          %v845 = vunpack.c.l.b16 %v766
          %v846 = vunpack.c.h.b16 %v766
          %v847 = vunpack.c.l.b16 %v767
          %v848 = vunpack.c.l.b16 %v768
          %v849 = vunpack.c.h.b16 %v768
          %v850 = vunpack.c.l.b16 %v769
          %v851 = vunpack.c.l.b16 %v770
          %v852 = vunpack.c.h.b16 %v770
          %v853 = vunpack.c.l.b16 %v771
          %v854 = vunpack.c.l.b16 %v772
          %v855 = vunpack.c.h.b16 %v772
          %v856 = vunpack.c.l.b16 %v773
          %v857 = vunpack.c.l.b16 %v774
          %v858 = vunpack.c.h.b16 %v774
          %v859 = vunpack.c.l.b16 %v775
          %v860 = vunpack.c.l.b16 %v776
          %v861 = vunpack.c.h.b16 %v776
          %v862 = vunpack.c.l.b16 %v777
          %v863 = vunpack.c.l.b16 %v778
          %v864 = vunpack.c.h.b16 %v778
          %v865 = vunpack.c.l.b16 %v779
          %v866 = vunpack.c.l.b16 %v780
          %v867 = vunpack.c.h.b16 %v780
          %v868 = vunpack.c.l.b16 %v781
          %v869 = vunpack.c.l.b16 %v782
          %v870 = vunpack.c.h.b16 %v782
          %v871 = vunpack.c.l.b16 %v783
          %v872 = vpack.c.b16 %v827, %v824
          %v873 = vpack.c.b16 %v828, %v825
          %v874 = vpack.c.b16 %v829, %v826
          %v875 = vpack.c.b16 %v833, %v830
          %v876 = vpack.c.b16 %v834, %v831
          %v877 = vpack.c.b16 %v835, %v832
          %v878 = vpack.c.b16 %v839, %v836
          %v879 = vpack.c.b16 %v840, %v837
          %v880 = vpack.c.b16 %v841, %v838
          %v881 = vpack.c.b16 %v845, %v842
          %v882 = vpack.c.b16 %v846, %v843
          %v883 = vpack.c.b16 %v847, %v844
          %v884 = vpack.c.b16 %v851, %v848
          %v885 = vpack.c.b16 %v852, %v849
          %v886 = vpack.c.b16 %v853, %v850
          %v887 = vpack.c.b16 %v857, %v854
          %v888 = vpack.c.b16 %v858, %v855
          %v889 = vpack.c.b16 %v859, %v856
          %v890 = vpack.c.b16 %v863, %v860
          %v891 = vpack.c.b16 %v864, %v861
          %v892 = vpack.c.b16 %v865, %v862
          %v893 = vpack.c.b16 %v869, %v866
          %v894 = vpack.c.b16 %v870, %v867
          %v895 = vpack.c.b16 %v871, %v868
          %920 = vmatpush.bf16.msra.mxu0 %v893
          %921 = vmatpush.bf16.msra.mxu0 %v890
          %922 = vmatpush.bf16.msra.mxu0 %v887
          %923 = vmatpush.bf16.msra.mxu0 %v884
          %924 = vmatpush.bf16.msra.mxu0 %v881
          %925 = vmatpush.bf16.msra.mxu0 %v878
          %926 = vmatpush.bf16.msra.mxu0 %v875
          %927 = vmatpush.bf16.msra.mxu0 %v872
          %928 = vmatmul.bf16.gmra.mxu0 %v751
          %v929 = vpop.f32.mrf.mxu0
          %v930 = vadd.f32 %v786, %v929
          %v931 = vpop.f32.mrf.mxu0
          %932 = vdwg.mxu0
          %933 = vmatpush.bf16.msra.mxu0 %v894
          %934 = vmatpush.bf16.msra.mxu0 %v891
          %935 = vmatpush.bf16.msra.mxu0 %v888
          %936 = vmatpush.bf16.msra.mxu0 %v885
          %937 = vmatpush.bf16.msra.mxu0 %v882
          %938 = vmatpush.bf16.msra.mxu0 %v879
          %939 = vmatpush.bf16.msra.mxu0 %v876
          %940 = vmatpush.bf16.msra.mxu0 %v873
          %941 = vmatmul.bf16.gmra.mxu0 %v751
          %v942 = vpop.f32.mrf.mxu0
          %v943 = vadd.f32 %v787, %v942
          %v944 = vpop.f32.mrf.mxu0
          %945 = vdwg.mxu0
          %946 = vmatpush.bf16.msra.mxu0 %v895
          %947 = vmatpush.bf16.msra.mxu0 %v892
          %948 = vmatpush.bf16.msra.mxu0 %v889
          %949 = vmatpush.bf16.msra.mxu0 %v886
          %950 = vmatpush.bf16.msra.mxu0 %v883
          %951 = vmatpush.bf16.msra.mxu0 %v880
          %952 = vmatpush.bf16.msra.mxu0 %v877
          %953 = vmatpush.bf16.msra.mxu0 %v874
          %954 = vmatmul.bf16.gmra.mxu0 %v751
          %v955 = vpop.f32.mrf.mxu0
          %v956 = vadd.f32 %v788, %v955
          %v957 = vpop.f32.mrf.mxu0
          %958 = vdwg.mxu0
          %v959 = vadd.f32 %v722, %v930
          %v960 = vxor.u32 %v959, 2147483648
          %v961 = vmul.f32 %v960, 1.442695
          %v962 = vpow.pop %v961
          %v963 = vadd.f32 %v962, 1.0
          %v964 = vrcp.pop %v963
          %v965 = vmul.f32 %v963, %v964
          %v966 = vsub.f32 1.0, %v965
          %v967 = vmul.f32 %v964, %v966
          %v968 = vadd.f32 %v964, %v967
          %vm969 = vweird.f32 %v963
          %vm970 = vweird.f32 %v964
          %vm971 = vmor %vm969, %vm970
          %v972 = vsel %vm971, %v964, %v968
          %v973 = vand.u32 2147483647, %v963
          %vm974 = vcmp.eq.f32.partialorder %v973, 8.507059e+37
          %v975 = vand.u32 %v963, 2147483648
          %v976 = vor.u32 1.1754944e-38, %v975
          %v977 = vsel %vm974, %v976, %v972
          %v978 = vmul.f32 1.0, %v977
          %v979 = vadd.f32 %v735, %v943
          %v980 = vxor.u32 %v979, 2147483648
          %v981 = vmul.f32 %v980, 1.442695
          %v982 = vpow.pop %v981
          %v983 = vadd.f32 %v982, 1.0
          %v984 = vrcp.pop %v983
          %v985 = vmul.f32 %v983, %v984
          %v986 = vsub.f32 1.0, %v985
          %v987 = vmul.f32 %v984, %v986
          %v988 = vadd.f32 %v984, %v987
          %vm989 = vweird.f32 %v983
          %vm990 = vweird.f32 %v984
          %vm991 = vmor %vm989, %vm990
          %v992 = vsel %vm991, %v984, %v988
          %v993 = vand.u32 2147483647, %v983
          %vm994 = vcmp.eq.f32.partialorder %v993, 8.507059e+37
          %v995 = vand.u32 %v983, 2147483648
          %v996 = vor.u32 1.1754944e-38, %v995
          %v997 = vsel %vm994, %v996, %v992
          %v998 = vmul.f32 1.0, %v997
          %v999 = vmul.f32 %v978, %v956
          %v1000 = vadd.f32 %v748, %v999
          %v1001 = vtanh.pop %v1000
          %v1002 = vsub.f32 1.0, %v998
          %v1003 = vmul.f32 %v1002, %v1001
          %v1004 = vmul.f32 %v998, %v543
          %v1005 = vadd.f32 %v1003, %v1004
          %1006 = vst [vmem:[#allocation12] sm:$0xff] %v1005
          %v1007 = vld [vmem:[%s2] sm:$0xf]
          %v1008 = vld [vmem:[%s2 + $0x4] sm:$0xf]
          %v1009 = vld [vmem:[%s2 + $0x8] sm:$0xf]
          %v1010 = vld [vmem:[%s2 + $0xc] sm:$0xf]
          %v1011 = vld [vmem:[%s2 + $0x10] sm:$0xf]
          %v1012 = vld [vmem:[%s2 + $0x14] sm:$0xf]
          %v1013 = vld [vmem:[%s2 + $0x18] sm:$0xf]
          %v1014 = vld [vmem:[%s2 + $0x1c] sm:$0xf]
          %v1015 = vpack.c.bf16 %v1005, %v1005
          %v1017 = vrot.slane %v1015, 3
          %vm1018 = vcmask 1040384
          %v1021 = vsel %vm1018, %v1015, %v1017
          %vm1023 = vcmask 1041409
          %v1024 = vsel %vm1023, %v1015, %v1017
          %v1026 = vrot.slane %v1024, 1
          %vm1027 = vcmask 1042434
          %v1028 = vsel %vm1027, %v1015, %v1017
          %v1030 = vrot.slane %v1028, 2
          %vm1031 = vcmask 1043459
          %v1032 = vsel %vm1031, %v1015, %v1017
          %v1034 = vrot.slane %v1032, 3
          %v1035 = vunpack.i.l.s16 %v1021
          %v1036 = vunpack.i.h.s16 %v1021
          %v1037 = vunpack.i.l.s16 %v1026
          %v1038 = vunpack.i.h.s16 %v1026
          %v1039 = vunpack.i.l.s16 %v1030
          %v1040 = vunpack.i.h.s16 %v1030
          %v1041 = vunpack.i.l.s16 %v1034
          %v1042 = vunpack.i.h.s16 %v1034
          %v1043 = vpack.i.b16 %v1035, %v1035
          %v1044 = vperm.slane %v1043, 0
          %1046 = vmatpush.bf16.xpose.msra.mxu0 0
          %1047 = vmatpush.bf16.xpose.msra.mxu0 0
          %1048 = vmatpush.bf16.xpose.msra.mxu0 0
          %1049 = vmatpush.bf16.xpose.msra.mxu0 0
          %1050 = vmatpush.bf16.xpose.msra.mxu0 0
          %1051 = vmatpush.bf16.xpose.msra.mxu0 0
          %1052 = vmatpush.bf16.xpose.msra.mxu0 0
          %1053 = vmatpush.bf16.xpose.msra.mxu0 %v1007
          %1054 = vmatmul.bf16.gmra.mxu0 %v1044
          %v1055 = vpop.f32.mrf.mxu0
          %v1056 = vadd.f32 0.0, %v1055
          %v1057 = vpop.f32.mrf.mxu0
          %1058 = vdwg.mxu0
          %v1059 = vpack.i.b16 %v1036, %v1036
          %v1060 = vperm.slane %v1059, 0
          %1062 = vmatpush.bf16.xpose.msra.mxu0 0
          %1063 = vmatpush.bf16.xpose.msra.mxu0 0
          %1064 = vmatpush.bf16.xpose.msra.mxu0 0
          %1065 = vmatpush.bf16.xpose.msra.mxu0 0
          %1066 = vmatpush.bf16.xpose.msra.mxu0 0
          %1067 = vmatpush.bf16.xpose.msra.mxu0 0
          %1068 = vmatpush.bf16.xpose.msra.mxu0 0
          %1069 = vmatpush.bf16.xpose.msra.mxu0 %v1008
          %1070 = vmatmul.bf16.gmra.mxu0 %v1060
          %v1071 = vpop.f32.mrf.mxu0
          %v1072 = vadd.f32 0.0, %v1071
          %v1073 = vpop.f32.mrf.mxu0
          %1074 = vdwg.mxu0
          %v1075 = vpack.i.b16 %v1037, %v1037
          %v1076 = vperm.slane %v1075, 0
          %1078 = vmatpush.bf16.xpose.msra.mxu0 0
          %1079 = vmatpush.bf16.xpose.msra.mxu0 0
          %1080 = vmatpush.bf16.xpose.msra.mxu0 0
          %1081 = vmatpush.bf16.xpose.msra.mxu0 0
          %1082 = vmatpush.bf16.xpose.msra.mxu0 0
          %1083 = vmatpush.bf16.xpose.msra.mxu0 0
          %1084 = vmatpush.bf16.xpose.msra.mxu0 0
          %1085 = vmatpush.bf16.xpose.msra.mxu0 %v1009
          %1086 = vmatmul.bf16.gmra.mxu0 %v1076
          %v1087 = vpop.f32.mrf.mxu0
          %v1088 = vadd.f32 0.0, %v1087
          %v1089 = vpop.f32.mrf.mxu0
          %1090 = vdwg.mxu0
          %v1091 = vpack.i.b16 %v1038, %v1038
          %v1092 = vperm.slane %v1091, 0
          %1094 = vmatpush.bf16.xpose.msra.mxu0 0
          %1095 = vmatpush.bf16.xpose.msra.mxu0 0
          %1096 = vmatpush.bf16.xpose.msra.mxu0 0
          %1097 = vmatpush.bf16.xpose.msra.mxu0 0
          %1098 = vmatpush.bf16.xpose.msra.mxu0 0
          %1099 = vmatpush.bf16.xpose.msra.mxu0 0
          %1100 = vmatpush.bf16.xpose.msra.mxu0 0
          %1101 = vmatpush.bf16.xpose.msra.mxu0 %v1010
          %1102 = vmatmul.bf16.gmra.mxu0 %v1092
          %v1103 = vpop.f32.mrf.mxu0
          %v1104 = vadd.f32 0.0, %v1103
          %v1105 = vpop.f32.mrf.mxu0
          %1106 = vdwg.mxu0
          %v1107 = vpack.i.b16 %v1039, %v1039
          %v1108 = vperm.slane %v1107, 0
          %1110 = vmatpush.bf16.xpose.msra.mxu0 0
          %1111 = vmatpush.bf16.xpose.msra.mxu0 0
          %1112 = vmatpush.bf16.xpose.msra.mxu0 0
          %1113 = vmatpush.bf16.xpose.msra.mxu0 0
          %1114 = vmatpush.bf16.xpose.msra.mxu0 0
          %1115 = vmatpush.bf16.xpose.msra.mxu0 0
          %1116 = vmatpush.bf16.xpose.msra.mxu0 0
          %1117 = vmatpush.bf16.xpose.msra.mxu0 %v1011
          %1118 = vmatmul.bf16.gmra.mxu0 %v1108
          %v1119 = vpop.f32.mrf.mxu0
          %v1120 = vadd.f32 0.0, %v1119
          %v1121 = vpop.f32.mrf.mxu0
          %1122 = vdwg.mxu0
          %v1123 = vpack.i.b16 %v1040, %v1040
          %v1124 = vperm.slane %v1123, 0
          %1126 = vmatpush.bf16.xpose.msra.mxu0 0
          %1127 = vmatpush.bf16.xpose.msra.mxu0 0
          %1128 = vmatpush.bf16.xpose.msra.mxu0 0
          %1129 = vmatpush.bf16.xpose.msra.mxu0 0
          %1130 = vmatpush.bf16.xpose.msra.mxu0 0
          %1131 = vmatpush.bf16.xpose.msra.mxu0 0
          %1132 = vmatpush.bf16.xpose.msra.mxu0 0
          %1133 = vmatpush.bf16.xpose.msra.mxu0 %v1012
          %1134 = vmatmul.bf16.gmra.mxu0 %v1124
          %v1135 = vpop.f32.mrf.mxu0
          %v1136 = vadd.f32 0.0, %v1135
          %v1137 = vpop.f32.mrf.mxu0
          %1138 = vdwg.mxu0
          %v1139 = vpack.i.b16 %v1041, %v1041
          %v1140 = vperm.slane %v1139, 0
          %1142 = vmatpush.bf16.xpose.msra.mxu0 0
          %1143 = vmatpush.bf16.xpose.msra.mxu0 0
          %1144 = vmatpush.bf16.xpose.msra.mxu0 0
          %1145 = vmatpush.bf16.xpose.msra.mxu0 0
          %1146 = vmatpush.bf16.xpose.msra.mxu0 0
          %1147 = vmatpush.bf16.xpose.msra.mxu0 0
          %1148 = vmatpush.bf16.xpose.msra.mxu0 0
          %1149 = vmatpush.bf16.xpose.msra.mxu0 %v1013
          %1150 = vmatmul.bf16.gmra.mxu0 %v1140
          %v1151 = vpop.f32.mrf.mxu0
          %v1152 = vadd.f32 0.0, %v1151
          %v1153 = vpop.f32.mrf.mxu0
          %1154 = vdwg.mxu0
          %v1155 = vpack.i.b16 %v1042, %v1042
          %v1156 = vperm.slane %v1155, 0
          %1158 = vmatpush.bf16.xpose.msra.mxu0 0
          %1159 = vmatpush.bf16.xpose.msra.mxu0 0
          %1160 = vmatpush.bf16.xpose.msra.mxu0 0
          %1161 = vmatpush.bf16.xpose.msra.mxu0 0
          %1162 = vmatpush.bf16.xpose.msra.mxu0 0
          %1163 = vmatpush.bf16.xpose.msra.mxu0 0
          %1164 = vmatpush.bf16.xpose.msra.mxu0 0
          %1165 = vmatpush.bf16.xpose.msra.mxu0 %v1014
          %1166 = vmatmul.bf16.gmra.mxu0 %v1156
          %v1167 = vpop.f32.mrf.mxu0
          %v1168 = vadd.f32 0.0, %v1167
          %v1169 = vpop.f32.mrf.mxu0
          %1170 = vdwg.mxu0
          %vm1171 = vcmask 57344
          %v1172 = vsel %vm1171, %v1056, -inf
          %1173 = vmax.xlane.f32.xlu0 %v1172
          %v1174 = vpop.xlane.xlu0 %1173
          %v1175 = vsel %vm1171, %v1072, -inf
          %1176 = vmax.xlane.f32.xlu0 %v1175
          %v1177 = vpop.xlane.xlu0 %1176
          %v1178 = vsel %vm1171, %v1088, -inf
          %1179 = vmax.xlane.f32.xlu0 %v1178
          %v1180 = vpop.xlane.xlu0 %1179
          %v1181 = vsel %vm1171, %v1104, -inf
          %1182 = vmax.xlane.f32.xlu0 %v1181
          %v1183 = vpop.xlane.xlu0 %1182
          %v1184 = vsel %vm1171, %v1120, -inf
          %1185 = vmax.xlane.f32.xlu0 %v1184
          %v1186 = vpop.xlane.xlu0 %1185
          %v1187 = vsel %vm1171, %v1136, -inf
          %1188 = vmax.xlane.f32.xlu0 %v1187
          %v1189 = vpop.xlane.xlu0 %1188
          %v1190 = vsel %vm1171, %v1152, -inf
          %1191 = vmax.xlane.f32.xlu0 %v1190
          %v1192 = vpop.xlane.xlu0 %1191
          %v1193 = vsel %vm1171, %v1168, -inf
          %1194 = vmax.xlane.f32.xlu0 %v1193
          %v1195 = vpop.xlane.xlu0 %1194
          %v1196 = vsub.f32 %v1056, %v1174
          %v1197 = vsub.f32 %v1072, %v1177
          %v1198 = vsub.f32 %v1088, %v1180
          %v1199 = vsub.f32 %v1104, %v1183
          %v1200 = vsub.f32 %v1120, %v1186
          %v1201 = vsub.f32 %v1136, %v1189
          %v1202 = vsub.f32 %v1152, %v1192
          %v1203 = vsub.f32 %v1168, %v1195
          %v1204 = vmul.f32 %v1196, 1.442695
          %v1205 = vpow.pop %v1204
          %v1206 = vmul.f32 %v1197, 1.442695
          %v1207 = vpow.pop %v1206
          %v1208 = vmul.f32 %v1198, 1.442695
          %v1209 = vpow.pop %v1208
          %v1210 = vmul.f32 %v1199, 1.442695
          %v1211 = vpow.pop %v1210
          %v1212 = vmul.f32 %v1200, 1.442695
          %v1213 = vpow.pop %v1212
          %v1214 = vmul.f32 %v1201, 1.442695
          %v1215 = vpow.pop %v1214
          %v1216 = vmul.f32 %v1202, 1.442695
          %v1217 = vpow.pop %v1216
          %v1218 = vmul.f32 %v1203, 1.442695
          %v1219 = vpow.pop %v1218
          %v1220 = vsel %vm1171, %v1205, 0.0
          %1221 = vadd.xlane.f32.xlu0 %v1220
          %v1222 = vpop.xlane.xlu0 %1221
          %v1223 = vsel %vm1171, %v1207, 0.0
          %1224 = vadd.xlane.f32.xlu0 %v1223
          %v1225 = vpop.xlane.xlu0 %1224
          %v1226 = vsel %vm1171, %v1209, 0.0
          %1227 = vadd.xlane.f32.xlu0 %v1226
          %v1228 = vpop.xlane.xlu0 %1227
          %v1229 = vsel %vm1171, %v1211, 0.0
          %1230 = vadd.xlane.f32.xlu0 %v1229
          %v1231 = vpop.xlane.xlu0 %1230
          %v1232 = vsel %vm1171, %v1213, 0.0
          %1233 = vadd.xlane.f32.xlu0 %v1232
          %v1234 = vpop.xlane.xlu0 %1233
          %v1235 = vsel %vm1171, %v1215, 0.0
          %1236 = vadd.xlane.f32.xlu0 %v1235
          %v1237 = vpop.xlane.xlu0 %1236
          %v1238 = vsel %vm1171, %v1217, 0.0
          %1239 = vadd.xlane.f32.xlu0 %v1238
          %v1240 = vpop.xlane.xlu0 %1239
          %v1241 = vsel %vm1171, %v1219, 0.0
          %1242 = vadd.xlane.f32.xlu0 %v1241
          %v1243 = vpop.xlane.xlu0 %1242
          %v1244 = vrcp.pop %v1222
          %v1245 = vrcp.pop %v1225
          %v1246 = vrcp.pop %v1228
          %v1247 = vrcp.pop %v1231
          %v1248 = vrcp.pop %v1234
          %v1249 = vrcp.pop %v1237
          %v1250 = vrcp.pop %v1240
          %v1251 = vrcp.pop %v1243
          %v1252 = vmul.f32 %v1205, %v1244
          %v1253 = vmul.f32 %v1207, %v1245
          %v1254 = vmul.f32 %v1209, %v1246
          %v1255 = vmul.f32 %v1211, %v1247
          %v1256 = vmul.f32 %v1213, %v1248
          %v1257 = vmul.f32 %v1215, %v1249
          %v1258 = vmul.f32 %v1217, %v1250
          %v1259 = vmul.f32 %v1219, %v1251
          %v1260 = vpack.c.bf16 %v1252, %v1252
          %v1261 = vpack.c.bf16 %v1253, %v1253
          %v1262 = vpack.c.bf16 %v1254, %v1254
          %v1263 = vpack.c.bf16 %v1255, %v1255
          %v1264 = vpack.c.bf16 %v1256, %v1256
          %v1265 = vpack.c.bf16 %v1257, %v1257
          %v1266 = vpack.c.bf16 %v1258, %v1258
          %v1267 = vpack.c.bf16 %v1259, %v1259
          %vm1268 = vcmask 64512
          %v1270 = vsel %vm1268, %v1260, 0
          %vm1272 = vcmask 1043456
          %v1274 = vsel %vm1272, %v1007, 0
          %1276 = vmatpush.bf16.msra.mxu0 0
          %1277 = vmatpush.bf16.msra.mxu0 0
          %1278 = vmatpush.bf16.msra.mxu0 0
          %1279 = vmatpush.bf16.msra.mxu0 0
          %1280 = vmatpush.bf16.msra.mxu0 0
          %1281 = vmatpush.bf16.msra.mxu0 0
          %1282 = vmatpush.bf16.msra.mxu0 0
          %1283 = vmatpush.bf16.msra.mxu0 %v1274
          %1284 = vmatmul.bf16.gmra.mxu0 %v1270
          %v1285 = vpop.f32.mrf.mxu0
          %v1286 = vadd.f32 0.0, %v1285
          %v1287 = vpop.f32.mrf.mxu0
          %1288 = vdwg.mxu0
          %v1290 = vsel %vm1268, %v1261, 0
          %v1293 = vsel %vm1272, %v1008, 0
          %1295 = vmatpush.bf16.msra.mxu0 0
          %1296 = vmatpush.bf16.msra.mxu0 0
          %1297 = vmatpush.bf16.msra.mxu0 0
          %1298 = vmatpush.bf16.msra.mxu0 0
          %1299 = vmatpush.bf16.msra.mxu0 0
          %1300 = vmatpush.bf16.msra.mxu0 0
          %1301 = vmatpush.bf16.msra.mxu0 0
          %1302 = vmatpush.bf16.msra.mxu0 %v1293
          %1303 = vmatmul.bf16.gmra.mxu0 %v1290
          %v1304 = vpop.f32.mrf.mxu0
          %v1305 = vadd.f32 0.0, %v1304
          %v1306 = vpop.f32.mrf.mxu0
          %1307 = vdwg.mxu0
          %v1309 = vsel %vm1268, %v1262, 0
          %v1312 = vsel %vm1272, %v1009, 0
          %1314 = vmatpush.bf16.msra.mxu0 0
          %1315 = vmatpush.bf16.msra.mxu0 0
          %1316 = vmatpush.bf16.msra.mxu0 0
          %1317 = vmatpush.bf16.msra.mxu0 0
          %1318 = vmatpush.bf16.msra.mxu0 0
          %1319 = vmatpush.bf16.msra.mxu0 0
          %1320 = vmatpush.bf16.msra.mxu0 0
          %1321 = vmatpush.bf16.msra.mxu0 %v1312
          %1322 = vmatmul.bf16.gmra.mxu0 %v1309
          %v1323 = vpop.f32.mrf.mxu0
          %v1324 = vadd.f32 0.0, %v1323
          %v1325 = vpop.f32.mrf.mxu0
          %1326 = vdwg.mxu0
          %v1328 = vsel %vm1268, %v1263, 0
          %v1331 = vsel %vm1272, %v1010, 0
          %1333 = vmatpush.bf16.msra.mxu0 0
          %1334 = vmatpush.bf16.msra.mxu0 0
          %1335 = vmatpush.bf16.msra.mxu0 0
          %1336 = vmatpush.bf16.msra.mxu0 0
          %1337 = vmatpush.bf16.msra.mxu0 0
          %1338 = vmatpush.bf16.msra.mxu0 0
          %1339 = vmatpush.bf16.msra.mxu0 0
          %1340 = vmatpush.bf16.msra.mxu0 %v1331
          %1341 = vmatmul.bf16.gmra.mxu0 %v1328
          %v1342 = vpop.f32.mrf.mxu0
          %v1343 = vadd.f32 0.0, %v1342
          %v1344 = vpop.f32.mrf.mxu0
          %1345 = vdwg.mxu0
          %v1347 = vsel %vm1268, %v1264, 0
          %v1350 = vsel %vm1272, %v1011, 0
          %1352 = vmatpush.bf16.msra.mxu0 0
          %1353 = vmatpush.bf16.msra.mxu0 0
          %1354 = vmatpush.bf16.msra.mxu0 0
          %1355 = vmatpush.bf16.msra.mxu0 0
          %1356 = vmatpush.bf16.msra.mxu0 0
          %1357 = vmatpush.bf16.msra.mxu0 0
          %1358 = vmatpush.bf16.msra.mxu0 0
          %1359 = vmatpush.bf16.msra.mxu0 %v1350
          %1360 = vmatmul.bf16.gmra.mxu0 %v1347
          %v1361 = vpop.f32.mrf.mxu0
          %v1362 = vadd.f32 0.0, %v1361
          %v1363 = vpop.f32.mrf.mxu0
          %1364 = vdwg.mxu0
          %v1366 = vsel %vm1268, %v1265, 0
          %v1369 = vsel %vm1272, %v1012, 0
          %1371 = vmatpush.bf16.msra.mxu0 0
          %1372 = vmatpush.bf16.msra.mxu0 0
          %1373 = vmatpush.bf16.msra.mxu0 0
          %1374 = vmatpush.bf16.msra.mxu0 0
          %1375 = vmatpush.bf16.msra.mxu0 0
          %1376 = vmatpush.bf16.msra.mxu0 0
          %1377 = vmatpush.bf16.msra.mxu0 0
          %1378 = vmatpush.bf16.msra.mxu0 %v1369
          %1379 = vmatmul.bf16.gmra.mxu0 %v1366
          %v1380 = vpop.f32.mrf.mxu0
          %v1381 = vadd.f32 0.0, %v1380
          %v1382 = vpop.f32.mrf.mxu0
          %1383 = vdwg.mxu0
          %v1385 = vsel %vm1268, %v1266, 0
          %v1388 = vsel %vm1272, %v1013, 0
          %1390 = vmatpush.bf16.msra.mxu0 0
          %1391 = vmatpush.bf16.msra.mxu0 0
          %1392 = vmatpush.bf16.msra.mxu0 0
          %1393 = vmatpush.bf16.msra.mxu0 0
          %1394 = vmatpush.bf16.msra.mxu0 0
          %1395 = vmatpush.bf16.msra.mxu0 0
          %1396 = vmatpush.bf16.msra.mxu0 0
          %1397 = vmatpush.bf16.msra.mxu0 %v1388
          %1398 = vmatmul.bf16.gmra.mxu0 %v1385
          %v1399 = vpop.f32.mrf.mxu0
          %v1400 = vadd.f32 0.0, %v1399
          %v1401 = vpop.f32.mrf.mxu0
          %1402 = vdwg.mxu0
          %v1404 = vsel %vm1268, %v1267, 0
          %v1407 = vsel %vm1272, %v1014, 0
          %1409 = vmatpush.bf16.msra.mxu0 0
          %1410 = vmatpush.bf16.msra.mxu0 0
          %1411 = vmatpush.bf16.msra.mxu0 0
          %1412 = vmatpush.bf16.msra.mxu0 0
          %1413 = vmatpush.bf16.msra.mxu0 0
          %1414 = vmatpush.bf16.msra.mxu0 0
          %1415 = vmatpush.bf16.msra.mxu0 0
          %1416 = vmatpush.bf16.msra.mxu0 %v1407
          %1417 = vmatmul.bf16.gmra.mxu0 %v1404
          %v1418 = vpop.f32.mrf.mxu0
          %v1419 = vadd.f32 0.0, %v1418
          %v1420 = vpop.f32.mrf.mxu0
          %1421 = vdwg.mxu0
          %v1422 = vld [vmem:[#allocation8] sm:$0xf]
          %v1423 = vld [vmem:[#allocation8 + $0x4] sm:$0xf]
          %v1424 = vld [vmem:[#allocation8 + $0x8] sm:$0xf]
          %v1425 = vld [vmem:[#allocation8 + $0xc] sm:$0xf]
          %v1426 = vld [vmem:[#allocation8 + $0x10] sm:$0xf]
          %v1427 = vld [vmem:[#allocation8 + $0x14] sm:$0xf]
          %v1428 = vld [vmem:[#allocation8 + $0x18] sm:$0xf]
          %v1429 = vld [vmem:[#allocation8 + $0x1c] sm:$0xf]
          %v1430 = vld [vmem:[#allocation8 + $0x20] sm:$0xf]
          %v1431 = vld [vmem:[#allocation8 + $0x24] sm:$0xf]
          %v1432 = vld [vmem:[#allocation8 + $0x28] sm:$0xf]
          %v1433 = vld [vmem:[#allocation8 + $0x2c] sm:$0xf]
          %v1434 = vld [vmem:[#allocation8 + $0x30] sm:$0xf]
          %v1435 = vld [vmem:[#allocation8 + $0x34] sm:$0xf]
          %v1436 = vld [vmem:[#allocation8 + $0x38] sm:$0xf]
          %v1437 = vld [vmem:[#allocation8 + $0x3c] sm:$0xf]
          %v1438 = vpack.c.bf16 %v1286, %v1286
          %v1439 = vpack.c.bf16 %v1305, %v1305
          %v1440 = vpack.c.bf16 %v1324, %v1324
          %v1441 = vpack.c.bf16 %v1343, %v1343
          %v1442 = vpack.c.bf16 %v1362, %v1362
          %v1443 = vpack.c.bf16 %v1381, %v1381
          %v1444 = vpack.c.bf16 %v1400, %v1400
          %v1445 = vpack.c.bf16 %v1419, %v1419
          %v1446 = vld [vmem:[#allocation9] sm:$0xf]
          %v1447 = vld [vmem:[#allocation9 + $0x4] sm:$0xf]
          %v1448 = vld [vmem:[#allocation9 + $0x8] sm:$0xf]
          %v1449 = vld [vmem:[#allocation9 + $0xc] sm:$0xf]
          %v1450 = vld [vmem:[#allocation9 + $0x10] sm:$0xf]
          %v1451 = vld [vmem:[#allocation9 + $0x14] sm:$0xf]
          %v1452 = vld [vmem:[#allocation9 + $0x18] sm:$0xf]
          %v1453 = vld [vmem:[#allocation9 + $0x1c] sm:$0xf]
          %v1454 = vld [vmem:[#allocation9 + $0x20] sm:$0xf]
          %v1455 = vld [vmem:[#allocation9 + $0x24] sm:$0xf]
          %v1456 = vld [vmem:[#allocation9 + $0x28] sm:$0xf]
          %v1457 = vld [vmem:[#allocation9 + $0x2c] sm:$0xf]
          %v1458 = vld [vmem:[#allocation9 + $0x30] sm:$0xf]
          %v1459 = vld [vmem:[#allocation9 + $0x34] sm:$0xf]
          %v1460 = vld [vmem:[#allocation9 + $0x38] sm:$0xf]
          %v1461 = vld [vmem:[#allocation9 + $0x3c] sm:$0xf]
          %v1470 = vunpack.c.l.b16 %v1438
          %v1471 = vunpack.c.l.b16 %v1439
          %v1472 = vunpack.c.l.b16 %v1440
          %v1473 = vunpack.c.l.b16 %v1441
          %v1474 = vunpack.c.l.b16 %v1442
          %v1475 = vunpack.c.l.b16 %v1443
          %v1476 = vunpack.c.l.b16 %v1444
          %v1477 = vunpack.c.l.b16 %v1445
          %v1478 = vrot.slane %v1471, 7
          %v1479 = vsel %vm1023, %v1478, %v1470
          %v1480 = vrot.slane %v1472, 6
          %v1481 = vsel %vm1027, %v1480, %v1479
          %v1482 = vrot.slane %v1473, 5
          %v1483 = vsel %vm1031, %v1482, %v1481
          %v1484 = vrot.slane %v1474, 4
          %vm1485 = vcmask 1044484
          %v1486 = vsel %vm1485, %v1484, %v1483
          %v1487 = vrot.slane %v1475, 3
          %vm1488 = vcmask 1045509
          %v1489 = vsel %vm1488, %v1487, %v1486
          %v1490 = vrot.slane %v1476, 2
          %vm1491 = vcmask 1046534
          %v1492 = vsel %vm1491, %v1490, %v1489
          %v1493 = vrot.slane %v1477, 1
          %vm1494 = vcmask 1047559
          %v1495 = vsel %vm1494, %v1493, %v1492
          %v1496 = vpack.c.b16 %v1495, %v1495
          %v1514 = vunpack.c.l.b16 %v1446
          %v1515 = vunpack.c.l.b16 %v1447
          %v1516 = vunpack.c.l.b16 %v1448
          %v1517 = vunpack.c.l.b16 %v1449
          %v1518 = vunpack.c.l.b16 %v1450
          %v1519 = vunpack.c.l.b16 %v1451
          %v1520 = vunpack.c.l.b16 %v1452
          %v1521 = vunpack.c.l.b16 %v1453
          %v1522 = vunpack.c.l.b16 %v1454
          %v1523 = vunpack.c.l.b16 %v1455
          %v1524 = vunpack.c.l.b16 %v1456
          %v1525 = vunpack.c.l.b16 %v1457
          %v1526 = vunpack.c.l.b16 %v1458
          %v1527 = vunpack.c.l.b16 %v1459
          %v1528 = vunpack.c.l.b16 %v1460
          %v1529 = vunpack.c.l.b16 %v1461
          %v1530 = vpack.c.b16 %v1515, %v1514
          %v1531 = vpack.c.b16 %v1517, %v1516
          %v1532 = vpack.c.b16 %v1519, %v1518
          %v1533 = vpack.c.b16 %v1521, %v1520
          %v1534 = vpack.c.b16 %v1523, %v1522
          %v1535 = vpack.c.b16 %v1525, %v1524
          %v1536 = vpack.c.b16 %v1527, %v1526
          %v1537 = vpack.c.b16 %v1529, %v1528
          %1546 = vmatpush.bf16.msra.mxu0 %v1537
          %1547 = vmatpush.bf16.msra.mxu0 %v1536
          %1548 = vmatpush.bf16.msra.mxu0 %v1535
          %1549 = vmatpush.bf16.msra.mxu0 %v1534
          %1550 = vmatpush.bf16.msra.mxu0 %v1533
          %1551 = vmatpush.bf16.msra.mxu0 %v1532
          %1552 = vmatpush.bf16.msra.mxu0 %v1531
          %1553 = vmatpush.bf16.msra.mxu0 %v1530
          %1554 = vmatmul.bf16.gmra.mxu0 %v1496
          %v1555 = vpop.f32.mrf.mxu0
          %v1556 = vadd.f32 0.0, %v1555
          %v1557 = vpop.f32.mrf.mxu0
          %1558 = vdwg.mxu0
          %v1575 = vunpack.c.l.b16 %v1422
          %v1576 = vunpack.c.l.b16 %v1423
          %v1577 = vunpack.c.l.b16 %v1424
          %v1578 = vunpack.c.l.b16 %v1425
          %v1579 = vunpack.c.l.b16 %v1426
          %v1580 = vunpack.c.l.b16 %v1427
          %v1581 = vunpack.c.l.b16 %v1428
          %v1582 = vunpack.c.l.b16 %v1429
          %v1583 = vunpack.c.l.b16 %v1430
          %v1584 = vunpack.c.l.b16 %v1431
          %v1585 = vunpack.c.l.b16 %v1432
          %v1586 = vunpack.c.l.b16 %v1433
          %v1587 = vunpack.c.l.b16 %v1434
          %v1588 = vunpack.c.l.b16 %v1435
          %v1589 = vunpack.c.l.b16 %v1436
          %v1590 = vunpack.c.l.b16 %v1437
          %v1591 = vpack.c.b16 %v1576, %v1575
          %v1592 = vpack.c.b16 %v1578, %v1577
          %v1593 = vpack.c.b16 %v1580, %v1579
          %v1594 = vpack.c.b16 %v1582, %v1581
          %v1595 = vpack.c.b16 %v1584, %v1583
          %v1596 = vpack.c.b16 %v1586, %v1585
          %v1597 = vpack.c.b16 %v1588, %v1587
          %v1598 = vpack.c.b16 %v1590, %v1589
          %1607 = vmatpush.bf16.msra.mxu0 %v1598
          %1608 = vmatpush.bf16.msra.mxu0 %v1597
          %1609 = vmatpush.bf16.msra.mxu0 %v1596
          %1610 = vmatpush.bf16.msra.mxu0 %v1595
          %1611 = vmatpush.bf16.msra.mxu0 %v1594
          %1612 = vmatpush.bf16.msra.mxu0 %v1593
          %1613 = vmatpush.bf16.msra.mxu0 %v1592
          %1614 = vmatpush.bf16.msra.mxu0 %v1591
          %1615 = vmatmul.bf16.gmra.mxu0 %v1015
          %v1616 = vpop.f32.mrf.mxu0
          %v1617 = vadd.f32 %v1556, %v1616
          %v1618 = vpop.f32.mrf.mxu0
          %1619 = vdwg.mxu0
          %v1620 = vld [vmem:[%s9] sm:$0x1]
          %v1622 = vperm.slane %v1620, 0
          %v1624 = vadd.f32 %v1617, %v1622
          %v1625 = vtanh.pop %v1624
          %v1626 = vpack.c.bf16 %v1625, %v1625
          %1627 = vst [vmem:[#allocation2] sm:$0xf] %v1626
        $region92: #{luong_attn_decoder_step.2} parent=67 // pred_fallthru
          _
        %v1628 = vld [vmem:[#allocation2] sm:$0xf]
        %v1629 = vld [vmem:[%s484] sm:$0xf]
        %v1630 = vld [vmem:[%s484 + $0x4] sm:$0xf]
        %v1631 = vld [vmem:[%s484 + $0x8] sm:$0xf]
        %v1632 = vld [vmem:[%s484 + $0xc] sm:$0xf]
        %v1633 = vld [vmem:[%s484 + $0x10] sm:$0xf]
        %v1634 = vld [vmem:[%s484 + $0x14] sm:$0xf]
        %v1635 = vld [vmem:[%s484 + $0x18] sm:$0xf]
        %v1636 = vld [vmem:[%s484 + $0x1c] sm:$0xf]
        %v1637 = vld [vmem:[%s484 + $0x20] sm:$0xf]
        %v1638 = vld [vmem:[%s484 + $0x24] sm:$0xf]
        %v1639 = vld [vmem:[%s484 + $0x28] sm:$0xf]
        %v1640 = vld [vmem:[%s484 + $0x2c] sm:$0xf]
        %v1641 = vld [vmem:[%s484 + $0x30] sm:$0xf]
        %v1642 = vld [vmem:[%s484 + $0x34] sm:$0xf]
        %v1643 = vld [vmem:[%s484 + $0x38] sm:$0xf]
        %v1644 = vld [vmem:[%s484 + $0x3c] sm:$0xf]
        %v1645 = vld [vmem:[%s532] sm:$0x1]
        %v1647 = vperm.slane %v1645, 0
        %v1665 = vunpack.c.l.b16 %v1629
        %v1666 = vunpack.c.l.b16 %v1630
        %v1667 = vunpack.c.l.b16 %v1631
        %v1668 = vunpack.c.l.b16 %v1632
        %v1669 = vunpack.c.l.b16 %v1633
        %v1670 = vunpack.c.l.b16 %v1634
        %v1671 = vunpack.c.l.b16 %v1635
        %v1672 = vunpack.c.l.b16 %v1636
        %v1673 = vunpack.c.l.b16 %v1637
        %v1674 = vunpack.c.l.b16 %v1638
        %v1675 = vunpack.c.l.b16 %v1639
        %v1676 = vunpack.c.l.b16 %v1640
        %v1677 = vunpack.c.l.b16 %v1641
        %v1678 = vunpack.c.l.b16 %v1642
        %v1679 = vunpack.c.l.b16 %v1643
        %v1680 = vunpack.c.l.b16 %v1644
        %v1681 = vpack.c.b16 %v1666, %v1665
        %v1682 = vpack.c.b16 %v1668, %v1667
        %v1683 = vpack.c.b16 %v1670, %v1669
        %v1684 = vpack.c.b16 %v1672, %v1671
        %v1685 = vpack.c.b16 %v1674, %v1673
        %v1686 = vpack.c.b16 %v1676, %v1675
        %v1687 = vpack.c.b16 %v1678, %v1677
        %v1688 = vpack.c.b16 %v1680, %v1679
        %1697 = vmatpush.bf16.msra.mxu0 %v1688
        %1698 = vmatpush.bf16.msra.mxu0 %v1687
        %1699 = vmatpush.bf16.msra.mxu0 %v1686
        %1700 = vmatpush.bf16.msra.mxu0 %v1685
        %1701 = vmatpush.bf16.msra.mxu0 %v1684
        %1702 = vmatpush.bf16.msra.mxu0 %v1683
        %1703 = vmatpush.bf16.msra.mxu0 %v1682
        %1704 = vmatpush.bf16.msra.mxu0 %v1681
        %1705 = vmatmul.bf16.gmra.mxu0 %v1628
        %v1706 = vpop.f32.mrf.mxu0
        %v1707 = vadd.f32 %v1647, %v1706
        %v1708 = vpop.f32.mrf.mxu0
        %1709 = vdwg.mxu0
        %1710 = vst [vmem:[%s536] sm:$0xff] %v1707
        %p1711 = scmp.lt.s32.totalorder %s29, 1
        %s1712 = scalar_select %p1711, %s29, 1
        %s1713 = smul.addr %s1712, 8
        %s1714 = scalar_lea.vmem %s12, %s1713
        // Predicated region
        $region93: #{luong_attn_decoder_step.2} parent=67 // pred_check
          %p1715 = pneg %p309
        $region94: #{luong_attn_decoder_step.2} parent=67 // pred_check_branch
          %1717 = sbr.rel (%p1715) target = $region96
        $region95: #{luong_attn_decoder_step.2} parent=67 // pred_region
          _
        $region96: #{luong_attn_decoder_step.2} parent=67 // pred_fallthru
          _
        // Predicated region
        $region97: #{luong_attn_decoder_step.2} parent=67 // pred_check
          %p1718 = pneg %p330
        $region98: #{luong_attn_decoder_step.2} parent=67 // pred_check_branch
          %1720 = sbr.rel (%p1718) target = $region100
        $region99: #{luong_attn_decoder_step.2} parent=67 // pred_region
          %1722 = vsyncadd [#allocation5], 0
          %s1724 = sshll.u32 [#allocation12], 4
          %s1725 = int_to_ptr.vmem [resolvable:$true] %s1724
          %s1726 = sshll.u32 %s13, 4
          %s1727 = int_to_ptr.hbm [resolvable:$true] %s1726
          %1729 = dma.vmem_to_hbm [thread:$0]  %s1725, 128, %s1727, [#allocation5]
        $region100: #{luong_attn_decoder_step.2} parent=67 // pred_fallthru
          _
        // Predicated region
        $region101: #{luong_attn_decoder_step.2} parent=67 // pred_check
          %p1730 = pneg %p330
        $region102: #{luong_attn_decoder_step.2} parent=67 // pred_check_branch
          %1732 = sbr.rel (%p1730) target = $region104
        $region103: #{luong_attn_decoder_step.2} parent=67 // pred_region
          %1734 = dma.done [#allocation5], 128
        $region104: #{luong_attn_decoder_step.2} parent=67 // pred_fallthru
          _
      $region68: #{luong_attn_decoder_step.2} parent=5 // pred_fallthru
        _
      %p1735 = scmp.le.s32.totalorder 2, %s24
      // Predicated region
      $region105: #{luong_attn_decoder_step.2} parent=5 // pred_check
        %p1736 = pneg %p1735
      $region106: #{luong_attn_decoder_step.2} parent=5 // pred_check_branch
        %1738 = sbr.rel (%p1736) target = $region108
      $region107: #{luong_attn_decoder_step.2} parent=5 // pred_region
        %s1739 = ssub.s32 %s24, 2
        // Predicated region
        $region109: #{luong_attn_decoder_step.2} parent=107 // pred_check
          %p1740 = pneg %p315
        $region110: #{luong_attn_decoder_step.2} parent=107 // pred_check_branch
          %1742 = sbr.rel (%p1740) target = $region112
        $region111: #{luong_attn_decoder_step.2} parent=107 // pred_region
          %p1743 = scmp.lt.s32.totalorder %s30, 1
          %s1744 = scalar_select %p1743, %s30, 1
          %s1745 = smul.addr %s1744, 8
          %s1746 = scalar_lea.vmem %s12, %s1745
        $region112: #{luong_attn_decoder_step.2} parent=107 // pred_fallthru
          _
      $region108: #{luong_attn_decoder_step.2} parent=5 // pred_fallthru
        _
    $region6: #{luong_attn_decoder_step.2} parent=1 // loop_footer
      %s28 = sadd.s32 1, %s24
    $region7: #{luong_attn_decoder_step.2} parent=1 // loop_footer_branch
      %23 = sbr.rel target = $region3
    $region8: #{luong_attn_decoder_step.2} parent=1 // loop_exit
      _
    %1747 = vsyncpa [#allocation4], 1
    %s1748 = scalar_lea.sflag [#allocation4], 1
    %1749 = vsyncpa %s1748, 1
    %1750 = vsyncpa [#allocation7], 1
    %1751 = vsyncpa [#allocation10], 1
    %1752 = vsyncpa [#allocation5], 1
    %s1753 = scalar_lea.sflag [#allocation5], 1
    %1754 = vsyncpa %s1753, 1

</llo_original>
